<compile_context>
chip_gen: v5e
topology: v5e:2x2
jax: 0.10.0
libtpu: 0.0.40
codegen_flags: <defaults>
</compile_context>

<pallas_src>
import functools

import jax
import jax.numpy as jnp
from jax.experimental import pallas as pl
from jax.experimental.pallas import tpu as pltpu


# --------------------------- Fused forward kernel -----------------------------
def _fused_lstm_fc_kernel(L, T, B, H, O, *refs):
    """refs = (x2d, [w_ih, w_hh, b] * L, fc_w, fc_b, out).

    x2d:  (T*B, D) time-major flattened input (rows t*B : (t+1)*B are timestep t),
          B already padded to a multiple of 8.
    w_ih: (D_in, 4H), w_hh: (H, 4H), b: (1, 4H) with gate column order i,f,o,g.
    fc_w: (H, O), fc_b: (1, O)
    out:  (B, O)
    """
    x_ref = refs[0]
    layer_refs = refs[1:1 + 3 * L]
    fc_w_ref = refs[1 + 3 * L]
    fc_b_ref = refs[2 + 3 * L]
    out_ref = refs[3 + 3 * L]

    layer_in = x_ref[...]                    # (T*B, D) for layer 0
    h = None
    for l in range(L):
        w_ih = layer_refs[3 * l][...]        # (D_in, 4H)  resident in VMEM
        w_hh = layer_refs[3 * l + 1][...]    # (H, 4H)
        b = layer_refs[3 * l + 2][...]       # (1, 4H) = b_ih + b_hh, [i,f,o,g]

        # Hoisted input projection (+ bias) for ALL timesteps: one MXU matmul.
        gates_in = jnp.dot(layer_in, w_ih,
                           preferred_element_type=jnp.float32) + b  # (T*B, 4H)

        h = jnp.zeros((B, H), jnp.float32)
        c = jnp.zeros((B, H), jnp.float32)
        h_list = []
        for t in range(T):                   # fully unrolled serial recurrence
            gates = gates_in[t * B:(t + 1) * B, :] + jnp.dot(
                h, w_hh, preferred_element_type=jnp.float32)        # (B, 4H)
            # Gate columns are pre-permuted to [i, f, o, g]:
            #   sigmoid over the first 3H columns, tanh only over the last H.
            sig = jax.nn.sigmoid(gates[:, 0:3 * H])
            g_g = jnp.tanh(gates[:, 3 * H:4 * H])
            i_g = sig[:, 0:H]
            f_g = sig[:, H:2 * H]
            o_g = sig[:, 2 * H:3 * H]
            c = f_g * c + i_g * g_g
            h = o_g * jnp.tanh(c)
            if l < L - 1:
                h_list.append(h)             # SSA carry, no VMEM round-trip
        if l < L - 1:
            layer_in = jnp.concatenate(h_list, axis=0)   # (T*B, H)

    # Final Linear on the last timestep's hidden state: the only HBM store.
    out_ref[...] = jnp.dot(h, fc_w_ref[...],
                           preferred_element_type=jnp.float32) + fc_b_ref[...]


def lstm_model_forward(x_btd, kparams):
    """x_btd: (B, T, D) batch-first (PyTorch convention). Returns (B, output_size)."""
    B, T, D = x_btd.shape
    L = len(kparams["lstm"])
    H = kparams["lstm"][0]["w_hh"].shape[0]
    O = kparams["fc_w"].shape[1]

    # Pad batch to a multiple of 8 (f32 sublane count) so every per-step slice
    # and (B, .) elementwise op on the 16-step serial chain is sublane-aligned.
    B_pad = max(8, ((B + 7) // 8) * 8)
    if B_pad != B:
        x_btd = jnp.pad(x_btd, ((0, B_pad - B), (0, 0), (0, 0)))

    # One-time layout change to time-major flattened rows (single cheap XLA pass).
    x2d = jnp.transpose(x_btd, (1, 0, 2)).reshape(T * B_pad, D)

    flat_w = []
    weight_elems = 0
    for layer in kparams["lstm"]:
        flat_w += [layer["w_ih"], layer["w_hh"], layer["b"]]
        weight_elems += (layer["w_ih"].size + layer["w_hh"].size +
                         layer["b"].size)

    # Explicit VMEM budget (residency formula); keeps headroom under v7x's
    # 64 MiB physical and raises v5e/v6e's 16/32 MiB scoped defaults if needed.
    resident_bytes = 4 * (x2d.size + T * B_pad * H + weight_elems +
                          kparams["fc_w"].size + kparams["fc_b"].size +
                          B_pad * O)
    vmem_limit = min(48 * 1024 * 1024,
                     max(16 * 1024 * 1024, 4 * resident_bytes))

    kernel = functools.partial(_fused_lstm_fc_kernel, L, T, B_pad, H, O)
    n_in = 1 + 3 * L + 2
    vmem_spec = pl.BlockSpec(memory_space=pltpu.MemorySpace.VMEM)

    out = pl.pallas_call(
        kernel,
        out_shape=jax.ShapeDtypeStruct((B_pad, O), jnp.float32),
        in_specs=[vmem_spec] * n_in,
        out_specs=vmem_spec,
        compiler_params=pltpu.CompilerParams(vmem_limit_bytes=vmem_limit),
    )(x2d, *flat_w, kparams["fc_w"], kparams["fc_b"])

    return out[:B]


# ------------------------------ Param init ------------------------------------
def init_params(key, input_size, hidden_size, num_layers, output_size):
    """PyTorch-layout LSTM + Linear params (gate row order i,f,g,o)."""
    params = {"lstm": []}
    H = hidden_size
    k = 1.0 / jnp.sqrt(jnp.float32(H))
    for layer in range(num_layers):
        d_in = input_size if layer == 0 else H
        key, k1, k2, k3, k4 = jax.random.split(key, 5)
        params["lstm"].append({
            # PyTorch shapes: weight_ih (4H, d_in), weight_hh (4H, H), biases (4H,)
            "w_ih": jax.random.uniform(k1, (4 * H, d_in), jnp.float32, -k, k),
            "w_hh": jax.random.uniform(k2, (4 * H, H), jnp.float32, -k, k),
            "b_ih": jax.random.uniform(k3, (4 * H,), jnp.float32, -k, k),
            "b_hh": jax.random.uniform(k4, (4 * H,), jnp.float32, -k, k),
        })
    key, k5, k6 = jax.random.split(key, 3)
    kf = 1.0 / jnp.sqrt(jnp.float32(H))
    params["fc_w"] = jax.random.uniform(k5, (output_size, H), jnp.float32, -kf, kf)
    params["fc_b"] = jax.random.uniform(k6, (output_size,), jnp.float32, -kf, kf)
    return params


def prepare_kernel_params(params):
    """Transpose for x @ W, fold biases, permute gate columns [i,f,g,o] -> [i,f,o,g]."""
    kparams = {"lstm": []}
    for layer in params["lstm"]:
        H = layer["w_hh"].shape[1]
        perm = jnp.concatenate([
            jnp.arange(0, 2 * H),          # i, f stay put
            jnp.arange(3 * H, 4 * H),      # o moves to slot 2
            jnp.arange(2 * H, 3 * H),      # g moves to slot 3
        ])
        kparams["lstm"].append({
            "w_ih": layer["w_ih"].T[:, perm],                       # (d_in, 4H)
            "w_hh": layer["w_hh"].T[:, perm],                       # (H, 4H)
            "b": (layer["b_ih"] + layer["b_hh"])[perm].reshape(1, 4 * H),
        })
    kparams["fc_w"] = params["fc_w"].T                              # (H, O)
    kparams["fc_b"] = params["fc_b"].reshape(1, -1)                 # (1, O)
    return kparams


# --------------------------- Pure-JAX reference --------------------------------
def reference_forward(x_btd, params):
    """Standard PyTorch LSTM semantics (gate order i,f,g,o), f32."""
    B, T, D = x_btd.shape
    h_seq = jnp.transpose(x_btd, (1, 0, 2))            # (T, B, D)
    for layer in params["lstm"]:
        H = layer["w_hh"].shape[1]
        w_ih = layer["w_ih"].T                          # (d_in, 4H)
        w_hh = layer["w_hh"].T                          # (H, 4H)
        b = (layer["b_ih"] + layer["b_hh"]).reshape(1, 4 * H)
        h = jnp.zeros((B, H), jnp.float32)
        c = jnp.zeros((B, H), jnp.float32)
        outs = []
        for t in range(T):
            gates = h_seq[t] @ w_ih + h @ w_hh + b
            i = jax.nn.sigmoid(gates[:, 0:H])
            f = jax.nn.sigmoid(gates[:, H:2 * H])
            g = jnp.tanh(gates[:, 2 * H:3 * H])
            o = jax.nn.sigmoid(gates[:, 3 * H:4 * H])
            c = f * c + i * g
            h = o * jnp.tanh(c)
            outs.append(h)
        h_seq = jnp.stack(outs, axis=0)
    return h_seq[-1] @ params["fc_w"].T + params["fc_b"].reshape(1, -1)


if __name__ == "__main__":
    # batch=2, seq=8, input_size=4, hidden_size=32, num_layers=2, output_size=4
    B, T, D, H, L, O = 2, 8, 4, 32, 2, 4

    key = jax.random.PRNGKey(0)
    key, kx = jax.random.split(key)
    x = jax.random.normal(kx, (B, T, D), jnp.float32)

    params = init_params(key, D, H, L, O)           # PyTorch layout, [i,f,g,o]
    kparams = prepare_kernel_params(params)         # kernel layout, [i,f,o,g]

    fwd = jax.jit(lstm_model_forward)
    out = fwd(x, kparams)
    out = jax.block_until_ready(out)

    ref = reference_forward(x, params)
    assert out.shape == (B, O)
    assert jnp.max(jnp.abs(out - ref)) < 1e-4, "mismatch vs pure-JAX reference"

    print("KERNEL_OK")
</pallas_src>

<mosaic_0001>
module attributes {stable_mosaic.version = 11 : i64} {
  func.func @_fused_lstm_fc_kernel(%arg0: memref<64x4xf32, #tpu.memory_space<vmem>>, %arg1: memref<4x128xf32, #tpu.memory_space<vmem>>, %arg2: memref<32x128xf32, #tpu.memory_space<vmem>>, %arg3: memref<1x128xf32, #tpu.memory_space<vmem>>, %arg4: memref<32x128xf32, #tpu.memory_space<vmem>>, %arg5: memref<32x128xf32, #tpu.memory_space<vmem>>, %arg6: memref<1x128xf32, #tpu.memory_space<vmem>>, %arg7: memref<32x4xf32, #tpu.memory_space<vmem>>, %arg8: memref<1x4xf32, #tpu.memory_space<vmem>>, %arg9: memref<8x4xf32, #tpu.memory_space<vmem>>) attributes {dimension_semantics = [], scalar_prefetch = 0 : i64, scratch_operands = 0 : i64, tpu.core_type = #tpu.core_type<tc>} {
    %c0 = arith.constant 0 : index
    %c0_0 = arith.constant 0 : index
    %0 = vector.load %arg0[%c0, %c0_0] : memref<64x4xf32, #tpu.memory_space<vmem>>, vector<64x4xf32>
    %c0_1 = arith.constant 0 : index
    %c0_2 = arith.constant 0 : index
    %1 = vector.load %arg1[%c0_1, %c0_2] : memref<4x128xf32, #tpu.memory_space<vmem>>, vector<4x128xf32>
    %c0_3 = arith.constant 0 : index
    %c0_4 = arith.constant 0 : index
    %2 = vector.load %arg2[%c0_3, %c0_4] : memref<32x128xf32, #tpu.memory_space<vmem>>, vector<32x128xf32>
    %c0_5 = arith.constant 0 : index
    %c0_6 = arith.constant 0 : index
    %3 = vector.load %arg3[%c0_5, %c0_6] : memref<1x128xf32, #tpu.memory_space<vmem>>, vector<1x128xf32>
    %cst = arith.constant dense<0.000000e+00> : vector<64x128xf32>
    %4 = tpu.matmul %0, %1, %cst {dimension_numbers = #tpu.dot_dimension_numbers<[1], [0], [0], [1], [0, 0, 1, 1], [], []>} : vector<64x4xf32>, vector<4x128xf32>, vector<64x128xf32> -> vector<64x128xf32>
    %5 = vector.broadcast %3 : vector<1x128xf32> to vector<64x128xf32>
    %6 = arith.addf %4, %5 : vector<64x128xf32>
    %cst_7 = arith.constant 0.000000e+00 : f32
    %7 = vector.broadcast %cst_7 : f32 to vector<8x32xf32>
    %cst_8 = arith.constant 0.000000e+00 : f32
    %8 = vector.broadcast %cst_8 : f32 to vector<8x32xf32>
    %9 = vector.extract_strided_slice %6 {offsets = [0, 0], sizes = [8, 128], strides = [1, 1]} : vector<64x128xf32> to vector<8x128xf32>
    %cst_9 = arith.constant dense<0.000000e+00> : vector<8x128xf32>
    %10 = tpu.matmul %7, %2, %cst_9 {dimension_numbers = #tpu.dot_dimension_numbers<[1], [0], [0], [1], [0, 0, 1, 1], [], []>} : vector<8x32xf32>, vector<32x128xf32>, vector<8x128xf32> -> vector<8x128xf32>
    %11 = arith.addf %9, %10 : vector<8x128xf32>
    %12 = vector.extract_strided_slice %11 {offsets = [0, 0], sizes = [8, 96], strides = [1, 1]} : vector<8x128xf32> to vector<8x96xf32>
    %13 = arith.negf %12 : vector<8x96xf32>
    %14 = math.exp %13 : vector<8x96xf32>
    %cst_10 = arith.constant 1.000000e+00 : f32
    %15 = vector.broadcast %cst_10 : f32 to vector<8x96xf32>
    %16 = arith.addf %15, %14 : vector<8x96xf32>
    %17 = arith.divf %15, %16 : vector<8x96xf32>
    %18 = vector.extract_strided_slice %11 {offsets = [0, 96], sizes = [8, 32], strides = [1, 1]} : vector<8x128xf32> to vector<8x32xf32>
    %19 = math.tanh %18 : vector<8x32xf32>
    %20 = vector.extract_strided_slice %17 {offsets = [0, 0], sizes = [8, 32], strides = [1, 1]} : vector<8x96xf32> to vector<8x32xf32>
    %21 = vector.extract_strided_slice %17 {offsets = [0, 32], sizes = [8, 32], strides = [1, 1]} : vector<8x96xf32> to vector<8x32xf32>
    %22 = vector.extract_strided_slice %17 {offsets = [0, 64], sizes = [8, 32], strides = [1, 1]} : vector<8x96xf32> to vector<8x32xf32>
    %23 = arith.mulf %21, %8 : vector<8x32xf32>
    %24 = arith.mulf %20, %19 : vector<8x32xf32>
    %25 = arith.addf %23, %24 : vector<8x32xf32>
    %26 = math.tanh %25 : vector<8x32xf32>
    %27 = arith.mulf %22, %26 : vector<8x32xf32>
    %28 = vector.extract_strided_slice %6 {offsets = [8, 0], sizes = [8, 128], strides = [1, 1]} : vector<64x128xf32> to vector<8x128xf32>
    %cst_11 = arith.constant dense<0.000000e+00> : vector<8x128xf32>
    %29 = tpu.matmul %27, %2, %cst_11 {dimension_numbers = #tpu.dot_dimension_numbers<[1], [0], [0], [1], [0, 0, 1, 1], [], []>} : vector<8x32xf32>, vector<32x128xf32>, vector<8x128xf32> -> vector<8x128xf32>
    %30 = arith.addf %28, %29 : vector<8x128xf32>
    %31 = vector.extract_strided_slice %30 {offsets = [0, 0], sizes = [8, 96], strides = [1, 1]} : vector<8x128xf32> to vector<8x96xf32>
    %32 = arith.negf %31 : vector<8x96xf32>
    %33 = math.exp %32 : vector<8x96xf32>
    %cst_12 = arith.constant 1.000000e+00 : f32
    %34 = vector.broadcast %cst_12 : f32 to vector<8x96xf32>
    %35 = arith.addf %34, %33 : vector<8x96xf32>
    %36 = arith.divf %34, %35 : vector<8x96xf32>
    %37 = vector.extract_strided_slice %30 {offsets = [0, 96], sizes = [8, 32], strides = [1, 1]} : vector<8x128xf32> to vector<8x32xf32>
    %38 = math.tanh %37 : vector<8x32xf32>
    %39 = vector.extract_strided_slice %36 {offsets = [0, 0], sizes = [8, 32], strides = [1, 1]} : vector<8x96xf32> to vector<8x32xf32>
    %40 = vector.extract_strided_slice %36 {offsets = [0, 32], sizes = [8, 32], strides = [1, 1]} : vector<8x96xf32> to vector<8x32xf32>
    %41 = vector.extract_strided_slice %36 {offsets = [0, 64], sizes = [8, 32], strides = [1, 1]} : vector<8x96xf32> to vector<8x32xf32>
    %42 = arith.mulf %40, %25 : vector<8x32xf32>
    %43 = arith.mulf %39, %38 : vector<8x32xf32>
    %44 = arith.addf %42, %43 : vector<8x32xf32>
    %45 = math.tanh %44 : vector<8x32xf32>
    %46 = arith.mulf %41, %45 : vector<8x32xf32>
    %47 = vector.extract_strided_slice %6 {offsets = [16, 0], sizes = [8, 128], strides = [1, 1]} : vector<64x128xf32> to vector<8x128xf32>
    %cst_13 = arith.constant dense<0.000000e+00> : vector<8x128xf32>
    %48 = tpu.matmul %46, %2, %cst_13 {dimension_numbers = #tpu.dot_dimension_numbers<[1], [0], [0], [1], [0, 0, 1, 1], [], []>} : vector<8x32xf32>, vector<32x128xf32>, vector<8x128xf32> -> vector<8x128xf32>
    %49 = arith.addf %47, %48 : vector<8x128xf32>
    %50 = vector.extract_strided_slice %49 {offsets = [0, 0], sizes = [8, 96], strides = [1, 1]} : vector<8x128xf32> to vector<8x96xf32>
    %51 = arith.negf %50 : vector<8x96xf32>
    %52 = math.exp %51 : vector<8x96xf32>
    %cst_14 = arith.constant 1.000000e+00 : f32
    %53 = vector.broadcast %cst_14 : f32 to vector<8x96xf32>
    %54 = arith.addf %53, %52 : vector<8x96xf32>
    %55 = arith.divf %53, %54 : vector<8x96xf32>
    %56 = vector.extract_strided_slice %49 {offsets = [0, 96], sizes = [8, 32], strides = [1, 1]} : vector<8x128xf32> to vector<8x32xf32>
    %57 = math.tanh %56 : vector<8x32xf32>
    %58 = vector.extract_strided_slice %55 {offsets = [0, 0], sizes = [8, 32], strides = [1, 1]} : vector<8x96xf32> to vector<8x32xf32>
    %59 = vector.extract_strided_slice %55 {offsets = [0, 32], sizes = [8, 32], strides = [1, 1]} : vector<8x96xf32> to vector<8x32xf32>
    %60 = vector.extract_strided_slice %55 {offsets = [0, 64], sizes = [8, 32], strides = [1, 1]} : vector<8x96xf32> to vector<8x32xf32>
    %61 = arith.mulf %59, %44 : vector<8x32xf32>
    %62 = arith.mulf %58, %57 : vector<8x32xf32>
    %63 = arith.addf %61, %62 : vector<8x32xf32>
    %64 = math.tanh %63 : vector<8x32xf32>
    %65 = arith.mulf %60, %64 : vector<8x32xf32>
    %66 = vector.extract_strided_slice %6 {offsets = [24, 0], sizes = [8, 128], strides = [1, 1]} : vector<64x128xf32> to vector<8x128xf32>
    %cst_15 = arith.constant dense<0.000000e+00> : vector<8x128xf32>
    %67 = tpu.matmul %65, %2, %cst_15 {dimension_numbers = #tpu.dot_dimension_numbers<[1], [0], [0], [1], [0, 0, 1, 1], [], []>} : vector<8x32xf32>, vector<32x128xf32>, vector<8x128xf32> -> vector<8x128xf32>
    %68 = arith.addf %66, %67 : vector<8x128xf32>
    %69 = vector.extract_strided_slice %68 {offsets = [0, 0], sizes = [8, 96], strides = [1, 1]} : vector<8x128xf32> to vector<8x96xf32>
    %70 = arith.negf %69 : vector<8x96xf32>
    %71 = math.exp %70 : vector<8x96xf32>
    %cst_16 = arith.constant 1.000000e+00 : f32
    %72 = vector.broadcast %cst_16 : f32 to vector<8x96xf32>
    %73 = arith.addf %72, %71 : vector<8x96xf32>
    %74 = arith.divf %72, %73 : vector<8x96xf32>
    %75 = vector.extract_strided_slice %68 {offsets = [0, 96], sizes = [8, 32], strides = [1, 1]} : vector<8x128xf32> to vector<8x32xf32>
    %76 = math.tanh %75 : vector<8x32xf32>
    %77 = vector.extract_strided_slice %74 {offsets = [0, 0], sizes = [8, 32], strides = [1, 1]} : vector<8x96xf32> to vector<8x32xf32>
    %78 = vector.extract_strided_slice %74 {offsets = [0, 32], sizes = [8, 32], strides = [1, 1]} : vector<8x96xf32> to vector<8x32xf32>
    %79 = vector.extract_strided_slice %74 {offsets = [0, 64], sizes = [8, 32], strides = [1, 1]} : vector<8x96xf32> to vector<8x32xf32>
    %80 = arith.mulf %78, %63 : vector<8x32xf32>
    %81 = arith.mulf %77, %76 : vector<8x32xf32>
    %82 = arith.addf %80, %81 : vector<8x32xf32>
    %83 = math.tanh %82 : vector<8x32xf32>
    %84 = arith.mulf %79, %83 : vector<8x32xf32>
    %85 = vector.extract_strided_slice %6 {offsets = [32, 0], sizes = [8, 128], strides = [1, 1]} : vector<64x128xf32> to vector<8x128xf32>
    %cst_17 = arith.constant dense<0.000000e+00> : vector<8x128xf32>
    %86 = tpu.matmul %84, %2, %cst_17 {dimension_numbers = #tpu.dot_dimension_numbers<[1], [0], [0], [1], [0, 0, 1, 1], [], []>} : vector<8x32xf32>, vector<32x128xf32>, vector<8x128xf32> -> vector<8x128xf32>
    %87 = arith.addf %85, %86 : vector<8x128xf32>
    %88 = vector.extract_strided_slice %87 {offsets = [0, 0], sizes = [8, 96], strides = [1, 1]} : vector<8x128xf32> to vector<8x96xf32>
    %89 = arith.negf %88 : vector<8x96xf32>
    %90 = math.exp %89 : vector<8x96xf32>
    %cst_18 = arith.constant 1.000000e+00 : f32
    %91 = vector.broadcast %cst_18 : f32 to vector<8x96xf32>
    %92 = arith.addf %91, %90 : vector<8x96xf32>
    %93 = arith.divf %91, %92 : vector<8x96xf32>
    %94 = vector.extract_strided_slice %87 {offsets = [0, 96], sizes = [8, 32], strides = [1, 1]} : vector<8x128xf32> to vector<8x32xf32>
    %95 = math.tanh %94 : vector<8x32xf32>
    %96 = vector.extract_strided_slice %93 {offsets = [0, 0], sizes = [8, 32], strides = [1, 1]} : vector<8x96xf32> to vector<8x32xf32>
    %97 = vector.extract_strided_slice %93 {offsets = [0, 32], sizes = [8, 32], strides = [1, 1]} : vector<8x96xf32> to vector<8x32xf32>
    %98 = vector.extract_strided_slice %93 {offsets = [0, 64], sizes = [8, 32], strides = [1, 1]} : vector<8x96xf32> to vector<8x32xf32>
    %99 = arith.mulf %97, %82 : vector<8x32xf32>
    %100 = arith.mulf %96, %95 : vector<8x32xf32>
    %101 = arith.addf %99, %100 : vector<8x32xf32>
    %102 = math.tanh %101 : vector<8x32xf32>
    %103 = arith.mulf %98, %102 : vector<8x32xf32>
    %104 = vector.extract_strided_slice %6 {offsets = [40, 0], sizes = [8, 128], strides = [1, 1]} : vector<64x128xf32> to vector<8x128xf32>
    %cst_19 = arith.constant dense<0.000000e+00> : vector<8x128xf32>
    %105 = tpu.matmul %103, %2, %cst_19 {dimension_numbers = #tpu.dot_dimension_numbers<[1], [0], [0], [1], [0, 0, 1, 1], [], []>} : vector<8x32xf32>, vector<32x128xf32>, vector<8x128xf32> -> vector<8x128xf32>
    %106 = arith.addf %104, %105 : vector<8x128xf32>
    %107 = vector.extract_strided_slice %106 {offsets = [0, 0], sizes = [8, 96], strides = [1, 1]} : vector<8x128xf32> to vector<8x96xf32>
    %108 = arith.negf %107 : vector<8x96xf32>
    %109 = math.exp %108 : vector<8x96xf32>
    %cst_20 = arith.constant 1.000000e+00 : f32
    %110 = vector.broadcast %cst_20 : f32 to vector<8x96xf32>
    %111 = arith.addf %110, %109 : vector<8x96xf32>
    %112 = arith.divf %110, %111 : vector<8x96xf32>
    %113 = vector.extract_strided_slice %106 {offsets = [0, 96], sizes = [8, 32], strides = [1, 1]} : vector<8x128xf32> to vector<8x32xf32>
    %114 = math.tanh %113 : vector<8x32xf32>
    %115 = vector.extract_strided_slice %112 {offsets = [0, 0], sizes = [8, 32], strides = [1, 1]} : vector<8x96xf32> to vector<8x32xf32>
    %116 = vector.extract_strided_slice %112 {offsets = [0, 32], sizes = [8, 32], strides = [1, 1]} : vector<8x96xf32> to vector<8x32xf32>
    %117 = vector.extract_strided_slice %112 {offsets = [0, 64], sizes = [8, 32], strides = [1, 1]} : vector<8x96xf32> to vector<8x32xf32>
    %118 = arith.mulf %116, %101 : vector<8x32xf32>
    %119 = arith.mulf %115, %114 : vector<8x32xf32>
    %120 = arith.addf %118, %119 : vector<8x32xf32>
    %121 = math.tanh %120 : vector<8x32xf32>
    %122 = arith.mulf %117, %121 : vector<8x32xf32>
    %123 = vector.extract_strided_slice %6 {offsets = [48, 0], sizes = [8, 128], strides = [1, 1]} : vector<64x128xf32> to vector<8x128xf32>
    %cst_21 = arith.constant dense<0.000000e+00> : vector<8x128xf32>
    %124 = tpu.matmul %122, %2, %cst_21 {dimension_numbers = #tpu.dot_dimension_numbers<[1], [0], [0], [1], [0, 0, 1, 1], [], []>} : vector<8x32xf32>, vector<32x128xf32>, vector<8x128xf32> -> vector<8x128xf32>
    %125 = arith.addf %123, %124 : vector<8x128xf32>
    %126 = vector.extract_strided_slice %125 {offsets = [0, 0], sizes = [8, 96], strides = [1, 1]} : vector<8x128xf32> to vector<8x96xf32>
    %127 = arith.negf %126 : vector<8x96xf32>
    %128 = math.exp %127 : vector<8x96xf32>
    %cst_22 = arith.constant 1.000000e+00 : f32
    %129 = vector.broadcast %cst_22 : f32 to vector<8x96xf32>
    %130 = arith.addf %129, %128 : vector<8x96xf32>
    %131 = arith.divf %129, %130 : vector<8x96xf32>
    %132 = vector.extract_strided_slice %125 {offsets = [0, 96], sizes = [8, 32], strides = [1, 1]} : vector<8x128xf32> to vector<8x32xf32>
    %133 = math.tanh %132 : vector<8x32xf32>
    %134 = vector.extract_strided_slice %131 {offsets = [0, 0], sizes = [8, 32], strides = [1, 1]} : vector<8x96xf32> to vector<8x32xf32>
    %135 = vector.extract_strided_slice %131 {offsets = [0, 32], sizes = [8, 32], strides = [1, 1]} : vector<8x96xf32> to vector<8x32xf32>
    %136 = vector.extract_strided_slice %131 {offsets = [0, 64], sizes = [8, 32], strides = [1, 1]} : vector<8x96xf32> to vector<8x32xf32>
    %137 = arith.mulf %135, %120 : vector<8x32xf32>
    %138 = arith.mulf %134, %133 : vector<8x32xf32>
    %139 = arith.addf %137, %138 : vector<8x32xf32>
    %140 = math.tanh %139 : vector<8x32xf32>
    %141 = arith.mulf %136, %140 : vector<8x32xf32>
    %142 = vector.extract_strided_slice %6 {offsets = [56, 0], sizes = [8, 128], strides = [1, 1]} : vector<64x128xf32> to vector<8x128xf32>
    %cst_23 = arith.constant dense<0.000000e+00> : vector<8x128xf32>
    %143 = tpu.matmul %141, %2, %cst_23 {dimension_numbers = #tpu.dot_dimension_numbers<[1], [0], [0], [1], [0, 0, 1, 1], [], []>} : vector<8x32xf32>, vector<32x128xf32>, vector<8x128xf32> -> vector<8x128xf32>
    %144 = arith.addf %142, %143 : vector<8x128xf32>
    %145 = vector.extract_strided_slice %144 {offsets = [0, 0], sizes = [8, 96], strides = [1, 1]} : vector<8x128xf32> to vector<8x96xf32>
    %146 = arith.negf %145 : vector<8x96xf32>
    %147 = math.exp %146 : vector<8x96xf32>
    %cst_24 = arith.constant 1.000000e+00 : f32
    %148 = vector.broadcast %cst_24 : f32 to vector<8x96xf32>
    %149 = arith.addf %148, %147 : vector<8x96xf32>
    %150 = arith.divf %148, %149 : vector<8x96xf32>
    %151 = vector.extract_strided_slice %144 {offsets = [0, 96], sizes = [8, 32], strides = [1, 1]} : vector<8x128xf32> to vector<8x32xf32>
    %152 = math.tanh %151 : vector<8x32xf32>
    %153 = vector.extract_strided_slice %150 {offsets = [0, 0], sizes = [8, 32], strides = [1, 1]} : vector<8x96xf32> to vector<8x32xf32>
    %154 = vector.extract_strided_slice %150 {offsets = [0, 32], sizes = [8, 32], strides = [1, 1]} : vector<8x96xf32> to vector<8x32xf32>
    %155 = vector.extract_strided_slice %150 {offsets = [0, 64], sizes = [8, 32], strides = [1, 1]} : vector<8x96xf32> to vector<8x32xf32>
    %156 = arith.mulf %154, %139 : vector<8x32xf32>
    %157 = arith.mulf %153, %152 : vector<8x32xf32>
    %158 = arith.addf %156, %157 : vector<8x32xf32>
    %159 = math.tanh %158 : vector<8x32xf32>
    %160 = arith.mulf %155, %159 : vector<8x32xf32>
    %161 = tpu.concatenate %27, %46, %65, %84, %103, %122, %141, %160 in 0 : vector<8x32xf32>, vector<8x32xf32>, vector<8x32xf32>, vector<8x32xf32>, vector<8x32xf32>, vector<8x32xf32>, vector<8x32xf32>, vector<8x32xf32> -> vector<64x32xf32>
    %c0_25 = arith.constant 0 : index
    %c0_26 = arith.constant 0 : index
    %162 = vector.load %arg4[%c0_25, %c0_26] : memref<32x128xf32, #tpu.memory_space<vmem>>, vector<32x128xf32>
    %c0_27 = arith.constant 0 : index
    %c0_28 = arith.constant 0 : index
    %163 = vector.load %arg5[%c0_27, %c0_28] : memref<32x128xf32, #tpu.memory_space<vmem>>, vector<32x128xf32>
    %c0_29 = arith.constant 0 : index
    %c0_30 = arith.constant 0 : index
    %164 = vector.load %arg6[%c0_29, %c0_30] : memref<1x128xf32, #tpu.memory_space<vmem>>, vector<1x128xf32>
    %cst_31 = arith.constant dense<0.000000e+00> : vector<64x128xf32>
    %165 = tpu.matmul %161, %162, %cst_31 {dimension_numbers = #tpu.dot_dimension_numbers<[1], [0], [0], [1], [0, 0, 1, 1], [], []>} : vector<64x32xf32>, vector<32x128xf32>, vector<64x128xf32> -> vector<64x128xf32>
    %166 = vector.broadcast %164 : vector<1x128xf32> to vector<64x128xf32>
    %167 = arith.addf %165, %166 : vector<64x128xf32>
    %cst_32 = arith.constant 0.000000e+00 : f32
    %168 = vector.broadcast %cst_32 : f32 to vector<8x32xf32>
    %cst_33 = arith.constant 0.000000e+00 : f32
    %169 = vector.broadcast %cst_33 : f32 to vector<8x32xf32>
    %170 = vector.extract_strided_slice %167 {offsets = [0, 0], sizes = [8, 128], strides = [1, 1]} : vector<64x128xf32> to vector<8x128xf32>
    %cst_34 = arith.constant dense<0.000000e+00> : vector<8x128xf32>
    %171 = tpu.matmul %168, %163, %cst_34 {dimension_numbers = #tpu.dot_dimension_numbers<[1], [0], [0], [1], [0, 0, 1, 1], [], []>} : vector<8x32xf32>, vector<32x128xf32>, vector<8x128xf32> -> vector<8x128xf32>
    %172 = arith.addf %170, %171 : vector<8x128xf32>
    %173 = vector.extract_strided_slice %172 {offsets = [0, 0], sizes = [8, 96], strides = [1, 1]} : vector<8x128xf32> to vector<8x96xf32>
    %174 = arith.negf %173 : vector<8x96xf32>
    %175 = math.exp %174 : vector<8x96xf32>
    %cst_35 = arith.constant 1.000000e+00 : f32
    %176 = vector.broadcast %cst_35 : f32 to vector<8x96xf32>
    %177 = arith.addf %176, %175 : vector<8x96xf32>
    %178 = arith.divf %176, %177 : vector<8x96xf32>
    %179 = vector.extract_strided_slice %172 {offsets = [0, 96], sizes = [8, 32], strides = [1, 1]} : vector<8x128xf32> to vector<8x32xf32>
    %180 = math.tanh %179 : vector<8x32xf32>
    %181 = vector.extract_strided_slice %178 {offsets = [0, 0], sizes = [8, 32], strides = [1, 1]} : vector<8x96xf32> to vector<8x32xf32>
    %182 = vector.extract_strided_slice %178 {offsets = [0, 32], sizes = [8, 32], strides = [1, 1]} : vector<8x96xf32> to vector<8x32xf32>
    %183 = vector.extract_strided_slice %178 {offsets = [0, 64], sizes = [8, 32], strides = [1, 1]} : vector<8x96xf32> to vector<8x32xf32>
    %184 = arith.mulf %182, %169 : vector<8x32xf32>
    %185 = arith.mulf %181, %180 : vector<8x32xf32>
    %186 = arith.addf %184, %185 : vector<8x32xf32>
    %187 = math.tanh %186 : vector<8x32xf32>
    %188 = arith.mulf %183, %187 : vector<8x32xf32>
    %189 = vector.extract_strided_slice %167 {offsets = [8, 0], sizes = [8, 128], strides = [1, 1]} : vector<64x128xf32> to vector<8x128xf32>
    %cst_36 = arith.constant dense<0.000000e+00> : vector<8x128xf32>
    %190 = tpu.matmul %188, %163, %cst_36 {dimension_numbers = #tpu.dot_dimension_numbers<[1], [0], [0], [1], [0, 0, 1, 1], [], []>} : vector<8x32xf32>, vector<32x128xf32>, vector<8x128xf32> -> vector<8x128xf32>
    %191 = arith.addf %189, %190 : vector<8x128xf32>
    %192 = vector.extract_strided_slice %191 {offsets = [0, 0], sizes = [8, 96], strides = [1, 1]} : vector<8x128xf32> to vector<8x96xf32>
    %193 = arith.negf %192 : vector<8x96xf32>
    %194 = math.exp %193 : vector<8x96xf32>
    %cst_37 = arith.constant 1.000000e+00 : f32
    %195 = vector.broadcast %cst_37 : f32 to vector<8x96xf32>
    %196 = arith.addf %195, %194 : vector<8x96xf32>
    %197 = arith.divf %195, %196 : vector<8x96xf32>
    %198 = vector.extract_strided_slice %191 {offsets = [0, 96], sizes = [8, 32], strides = [1, 1]} : vector<8x128xf32> to vector<8x32xf32>
    %199 = math.tanh %198 : vector<8x32xf32>
    %200 = vector.extract_strided_slice %197 {offsets = [0, 0], sizes = [8, 32], strides = [1, 1]} : vector<8x96xf32> to vector<8x32xf32>
    %201 = vector.extract_strided_slice %197 {offsets = [0, 32], sizes = [8, 32], strides = [1, 1]} : vector<8x96xf32> to vector<8x32xf32>
    %202 = vector.extract_strided_slice %197 {offsets = [0, 64], sizes = [8, 32], strides = [1, 1]} : vector<8x96xf32> to vector<8x32xf32>
    %203 = arith.mulf %201, %186 : vector<8x32xf32>
    %204 = arith.mulf %200, %199 : vector<8x32xf32>
    %205 = arith.addf %203, %204 : vector<8x32xf32>
    %206 = math.tanh %205 : vector<8x32xf32>
    %207 = arith.mulf %202, %206 : vector<8x32xf32>
    %208 = vector.extract_strided_slice %167 {offsets = [16, 0], sizes = [8, 128], strides = [1, 1]} : vector<64x128xf32> to vector<8x128xf32>
    %cst_38 = arith.constant dense<0.000000e+00> : vector<8x128xf32>
    %209 = tpu.matmul %207, %163, %cst_38 {dimension_numbers = #tpu.dot_dimension_numbers<[1], [0], [0], [1], [0, 0, 1, 1], [], []>} : vector<8x32xf32>, vector<32x128xf32>, vector<8x128xf32> -> vector<8x128xf32>
    %210 = arith.addf %208, %209 : vector<8x128xf32>
    %211 = vector.extract_strided_slice %210 {offsets = [0, 0], sizes = [8, 96], strides = [1, 1]} : vector<8x128xf32> to vector<8x96xf32>
    %212 = arith.negf %211 : vector<8x96xf32>
    %213 = math.exp %212 : vector<8x96xf32>
    %cst_39 = arith.constant 1.000000e+00 : f32
    %214 = vector.broadcast %cst_39 : f32 to vector<8x96xf32>
    %215 = arith.addf %214, %213 : vector<8x96xf32>
    %216 = arith.divf %214, %215 : vector<8x96xf32>
    %217 = vector.extract_strided_slice %210 {offsets = [0, 96], sizes = [8, 32], strides = [1, 1]} : vector<8x128xf32> to vector<8x32xf32>
    %218 = math.tanh %217 : vector<8x32xf32>
    %219 = vector.extract_strided_slice %216 {offsets = [0, 0], sizes = [8, 32], strides = [1, 1]} : vector<8x96xf32> to vector<8x32xf32>
    %220 = vector.extract_strided_slice %216 {offsets = [0, 32], sizes = [8, 32], strides = [1, 1]} : vector<8x96xf32> to vector<8x32xf32>
    %221 = vector.extract_strided_slice %216 {offsets = [0, 64], sizes = [8, 32], strides = [1, 1]} : vector<8x96xf32> to vector<8x32xf32>
    %222 = arith.mulf %220, %205 : vector<8x32xf32>
    %223 = arith.mulf %219, %218 : vector<8x32xf32>
    %224 = arith.addf %222, %223 : vector<8x32xf32>
    %225 = math.tanh %224 : vector<8x32xf32>
    %226 = arith.mulf %221, %225 : vector<8x32xf32>
    %227 = vector.extract_strided_slice %167 {offsets = [24, 0], sizes = [8, 128], strides = [1, 1]} : vector<64x128xf32> to vector<8x128xf32>
    %cst_40 = arith.constant dense<0.000000e+00> : vector<8x128xf32>
    %228 = tpu.matmul %226, %163, %cst_40 {dimension_numbers = #tpu.dot_dimension_numbers<[1], [0], [0], [1], [0, 0, 1, 1], [], []>} : vector<8x32xf32>, vector<32x128xf32>, vector<8x128xf32> -> vector<8x128xf32>
    %229 = arith.addf %227, %228 : vector<8x128xf32>
    %230 = vector.extract_strided_slice %229 {offsets = [0, 0], sizes = [8, 96], strides = [1, 1]} : vector<8x128xf32> to vector<8x96xf32>
    %231 = arith.negf %230 : vector<8x96xf32>
    %232 = math.exp %231 : vector<8x96xf32>
    %cst_41 = arith.constant 1.000000e+00 : f32
    %233 = vector.broadcast %cst_41 : f32 to vector<8x96xf32>
    %234 = arith.addf %233, %232 : vector<8x96xf32>
    %235 = arith.divf %233, %234 : vector<8x96xf32>
    %236 = vector.extract_strided_slice %229 {offsets = [0, 96], sizes = [8, 32], strides = [1, 1]} : vector<8x128xf32> to vector<8x32xf32>
    %237 = math.tanh %236 : vector<8x32xf32>
    %238 = vector.extract_strided_slice %235 {offsets = [0, 0], sizes = [8, 32], strides = [1, 1]} : vector<8x96xf32> to vector<8x32xf32>
    %239 = vector.extract_strided_slice %235 {offsets = [0, 32], sizes = [8, 32], strides = [1, 1]} : vector<8x96xf32> to vector<8x32xf32>
    %240 = vector.extract_strided_slice %235 {offsets = [0, 64], sizes = [8, 32], strides = [1, 1]} : vector<8x96xf32> to vector<8x32xf32>
    %241 = arith.mulf %239, %224 : vector<8x32xf32>
    %242 = arith.mulf %238, %237 : vector<8x32xf32>
    %243 = arith.addf %241, %242 : vector<8x32xf32>
    %244 = math.tanh %243 : vector<8x32xf32>
    %245 = arith.mulf %240, %244 : vector<8x32xf32>
    %246 = vector.extract_strided_slice %167 {offsets = [32, 0], sizes = [8, 128], strides = [1, 1]} : vector<64x128xf32> to vector<8x128xf32>
    %cst_42 = arith.constant dense<0.000000e+00> : vector<8x128xf32>
    %247 = tpu.matmul %245, %163, %cst_42 {dimension_numbers = #tpu.dot_dimension_numbers<[1], [0], [0], [1], [0, 0, 1, 1], [], []>} : vector<8x32xf32>, vector<32x128xf32>, vector<8x128xf32> -> vector<8x128xf32>
    %248 = arith.addf %246, %247 : vector<8x128xf32>
    %249 = vector.extract_strided_slice %248 {offsets = [0, 0], sizes = [8, 96], strides = [1, 1]} : vector<8x128xf32> to vector<8x96xf32>
    %250 = arith.negf %249 : vector<8x96xf32>
    %251 = math.exp %250 : vector<8x96xf32>
    %cst_43 = arith.constant 1.000000e+00 : f32
    %252 = vector.broadcast %cst_43 : f32 to vector<8x96xf32>
    %253 = arith.addf %252, %251 : vector<8x96xf32>
    %254 = arith.divf %252, %253 : vector<8x96xf32>
    %255 = vector.extract_strided_slice %248 {offsets = [0, 96], sizes = [8, 32], strides = [1, 1]} : vector<8x128xf32> to vector<8x32xf32>
    %256 = math.tanh %255 : vector<8x32xf32>
    %257 = vector.extract_strided_slice %254 {offsets = [0, 0], sizes = [8, 32], strides = [1, 1]} : vector<8x96xf32> to vector<8x32xf32>
    %258 = vector.extract_strided_slice %254 {offsets = [0, 32], sizes = [8, 32], strides = [1, 1]} : vector<8x96xf32> to vector<8x32xf32>
    %259 = vector.extract_strided_slice %254 {offsets = [0, 64], sizes = [8, 32], strides = [1, 1]} : vector<8x96xf32> to vector<8x32xf32>
    %260 = arith.mulf %258, %243 : vector<8x32xf32>
    %261 = arith.mulf %257, %256 : vector<8x32xf32>
    %262 = arith.addf %260, %261 : vector<8x32xf32>
    %263 = math.tanh %262 : vector<8x32xf32>
    %264 = arith.mulf %259, %263 : vector<8x32xf32>
    %265 = vector.extract_strided_slice %167 {offsets = [40, 0], sizes = [8, 128], strides = [1, 1]} : vector<64x128xf32> to vector<8x128xf32>
    %cst_44 = arith.constant dense<0.000000e+00> : vector<8x128xf32>
    %266 = tpu.matmul %264, %163, %cst_44 {dimension_numbers = #tpu.dot_dimension_numbers<[1], [0], [0], [1], [0, 0, 1, 1], [], []>} : vector<8x32xf32>, vector<32x128xf32>, vector<8x128xf32> -> vector<8x128xf32>
    %267 = arith.addf %265, %266 : vector<8x128xf32>
    %268 = vector.extract_strided_slice %267 {offsets = [0, 0], sizes = [8, 96], strides = [1, 1]} : vector<8x128xf32> to vector<8x96xf32>
    %269 = arith.negf %268 : vector<8x96xf32>
    %270 = math.exp %269 : vector<8x96xf32>
    %cst_45 = arith.constant 1.000000e+00 : f32
    %271 = vector.broadcast %cst_45 : f32 to vector<8x96xf32>
    %272 = arith.addf %271, %270 : vector<8x96xf32>
    %273 = arith.divf %271, %272 : vector<8x96xf32>
    %274 = vector.extract_strided_slice %267 {offsets = [0, 96], sizes = [8, 32], strides = [1, 1]} : vector<8x128xf32> to vector<8x32xf32>
    %275 = math.tanh %274 : vector<8x32xf32>
    %276 = vector.extract_strided_slice %273 {offsets = [0, 0], sizes = [8, 32], strides = [1, 1]} : vector<8x96xf32> to vector<8x32xf32>
    %277 = vector.extract_strided_slice %273 {offsets = [0, 32], sizes = [8, 32], strides = [1, 1]} : vector<8x96xf32> to vector<8x32xf32>
    %278 = vector.extract_strided_slice %273 {offsets = [0, 64], sizes = [8, 32], strides = [1, 1]} : vector<8x96xf32> to vector<8x32xf32>
    %279 = arith.mulf %277, %262 : vector<8x32xf32>
    %280 = arith.mulf %276, %275 : vector<8x32xf32>
    %281 = arith.addf %279, %280 : vector<8x32xf32>
    %282 = math.tanh %281 : vector<8x32xf32>
    %283 = arith.mulf %278, %282 : vector<8x32xf32>
    %284 = vector.extract_strided_slice %167 {offsets = [48, 0], sizes = [8, 128], strides = [1, 1]} : vector<64x128xf32> to vector<8x128xf32>
    %cst_46 = arith.constant dense<0.000000e+00> : vector<8x128xf32>
    %285 = tpu.matmul %283, %163, %cst_46 {dimension_numbers = #tpu.dot_dimension_numbers<[1], [0], [0], [1], [0, 0, 1, 1], [], []>} : vector<8x32xf32>, vector<32x128xf32>, vector<8x128xf32> -> vector<8x128xf32>
    %286 = arith.addf %284, %285 : vector<8x128xf32>
    %287 = vector.extract_strided_slice %286 {offsets = [0, 0], sizes = [8, 96], strides = [1, 1]} : vector<8x128xf32> to vector<8x96xf32>
    %288 = arith.negf %287 : vector<8x96xf32>
    %289 = math.exp %288 : vector<8x96xf32>
    %cst_47 = arith.constant 1.000000e+00 : f32
    %290 = vector.broadcast %cst_47 : f32 to vector<8x96xf32>
    %291 = arith.addf %290, %289 : vector<8x96xf32>
    %292 = arith.divf %290, %291 : vector<8x96xf32>
    %293 = vector.extract_strided_slice %286 {offsets = [0, 96], sizes = [8, 32], strides = [1, 1]} : vector<8x128xf32> to vector<8x32xf32>
    %294 = math.tanh %293 : vector<8x32xf32>
    %295 = vector.extract_strided_slice %292 {offsets = [0, 0], sizes = [8, 32], strides = [1, 1]} : vector<8x96xf32> to vector<8x32xf32>
    %296 = vector.extract_strided_slice %292 {offsets = [0, 32], sizes = [8, 32], strides = [1, 1]} : vector<8x96xf32> to vector<8x32xf32>
    %297 = vector.extract_strided_slice %292 {offsets = [0, 64], sizes = [8, 32], strides = [1, 1]} : vector<8x96xf32> to vector<8x32xf32>
    %298 = arith.mulf %296, %281 : vector<8x32xf32>
    %299 = arith.mulf %295, %294 : vector<8x32xf32>
    %300 = arith.addf %298, %299 : vector<8x32xf32>
    %301 = math.tanh %300 : vector<8x32xf32>
    %302 = arith.mulf %297, %301 : vector<8x32xf32>
    %303 = vector.extract_strided_slice %167 {offsets = [56, 0], sizes = [8, 128], strides = [1, 1]} : vector<64x128xf32> to vector<8x128xf32>
    %cst_48 = arith.constant dense<0.000000e+00> : vector<8x128xf32>
    %304 = tpu.matmul %302, %163, %cst_48 {dimension_numbers = #tpu.dot_dimension_numbers<[1], [0], [0], [1], [0, 0, 1, 1], [], []>} : vector<8x32xf32>, vector<32x128xf32>, vector<8x128xf32> -> vector<8x128xf32>
    %305 = arith.addf %303, %304 : vector<8x128xf32>
    %306 = vector.extract_strided_slice %305 {offsets = [0, 0], sizes = [8, 96], strides = [1, 1]} : vector<8x128xf32> to vector<8x96xf32>
    %307 = arith.negf %306 : vector<8x96xf32>
    %308 = math.exp %307 : vector<8x96xf32>
    %cst_49 = arith.constant 1.000000e+00 : f32
    %309 = vector.broadcast %cst_49 : f32 to vector<8x96xf32>
    %310 = arith.addf %309, %308 : vector<8x96xf32>
    %311 = arith.divf %309, %310 : vector<8x96xf32>
    %312 = vector.extract_strided_slice %305 {offsets = [0, 96], sizes = [8, 32], strides = [1, 1]} : vector<8x128xf32> to vector<8x32xf32>
    %313 = math.tanh %312 : vector<8x32xf32>
    %314 = vector.extract_strided_slice %311 {offsets = [0, 0], sizes = [8, 32], strides = [1, 1]} : vector<8x96xf32> to vector<8x32xf32>
    %315 = vector.extract_strided_slice %311 {offsets = [0, 32], sizes = [8, 32], strides = [1, 1]} : vector<8x96xf32> to vector<8x32xf32>
    %316 = vector.extract_strided_slice %311 {offsets = [0, 64], sizes = [8, 32], strides = [1, 1]} : vector<8x96xf32> to vector<8x32xf32>
    %317 = arith.mulf %315, %300 : vector<8x32xf32>
    %318 = arith.mulf %314, %313 : vector<8x32xf32>
    %319 = arith.addf %317, %318 : vector<8x32xf32>
    %320 = math.tanh %319 : vector<8x32xf32>
    %321 = arith.mulf %316, %320 : vector<8x32xf32>
    %c0_50 = arith.constant 0 : index
    %c0_51 = arith.constant 0 : index
    %322 = vector.load %arg7[%c0_50, %c0_51] : memref<32x4xf32, #tpu.memory_space<vmem>>, vector<32x4xf32>
    %cst_52 = arith.constant dense<0.000000e+00> : vector<8x4xf32>
    %323 = tpu.matmul %321, %322, %cst_52 {dimension_numbers = #tpu.dot_dimension_numbers<[1], [0], [0], [1], [0, 0, 1, 1], [], []>} : vector<8x32xf32>, vector<32x4xf32>, vector<8x4xf32> -> vector<8x4xf32>
    %c0_53 = arith.constant 0 : index
    %c0_54 = arith.constant 0 : index
    %324 = vector.load %arg8[%c0_53, %c0_54] : memref<1x4xf32, #tpu.memory_space<vmem>>, vector<1x4xf32>
    %325 = vector.broadcast %324 : vector<1x4xf32> to vector<8x4xf32>
    %326 = arith.addf %323, %325 : vector<8x4xf32>
    %c0_55 = arith.constant 0 : index
    %c0_56 = arith.constant 0 : index
    %327 = vector.load %arg9[%c0_55, %c0_56] : memref<8x4xf32, #tpu.memory_space<vmem>>, vector<8x4xf32>
    tpu.vector_store %arg9[%c0_55, %c0_56], %326 {strides = array<i32>} : memref<8x4xf32, #tpu.memory_space<vmem>>, vector<8x4xf32>,
    return
  }
}

</mosaic_0001>

<llo_original>
// kernel: lstm_model_forward.1
$region0: #{lstm_model_forward.1}
  #allocation0 [shape = 'u32[]', space=smem, size = 0x4, offset = 0x4, fixed_abs, tag = 'smem constant byte address 0x4 - core index']
  #allocation1 [shape = 'u32[72,128]{1,0:T(1,128)}', space=vmem, size = 0x9000, scoped, tag = 'internal scratch']
  %s0 = inlined_call_operand.vmem [shape: f32[64,4], index: 0, kind: input, shape index: {}]
  %s1 = inlined_call_operand.vmem [shape: f32[4,128], index: 1, kind: input, shape index: {}]
  %s2 = inlined_call_operand.vmem [shape: f32[32,128], index: 2, kind: input, shape index: {}]
  %s3 = inlined_call_operand.vmem [shape: f32[1,128], index: 3, kind: input, shape index: {}]
  %s4 = inlined_call_operand.vmem [shape: f32[32,128], index: 4, kind: input, shape index: {}]
  %s5 = inlined_call_operand.vmem [shape: f32[32,128], index: 5, kind: input, shape index: {}]
  %s6 = inlined_call_operand.vmem [shape: f32[1,128], index: 6, kind: input, shape index: {}]
  %s7 = inlined_call_operand.vmem [shape: f32[32,4], index: 7, kind: input, shape index: {}]
  %s8 = inlined_call_operand.vmem [shape: f32[1,4], index: 8, kind: input, shape index: {}]
  %s9 = inlined_call_operand.vmem [shape: f32[8,4], index: 9, kind: output, shape index: {}]
  %s10 = sld [smem:[#allocation0]]
  $region46: #{lstm_model_forward.1} parent=0
    _
  %s12 = ssub.s32 1, %s10
  %s13 = scalar_select 0, %s12, %s10
  // Predicated region
  $region2: #{lstm_model_forward.1} parent=0 // pred_check
    _
  $region3: #{lstm_model_forward.1} parent=0 // pred_check_branch
    %15 = sbr.rel (0) target = $region5
  $region4: #{lstm_model_forward.1} parent=0 // pred_region
    _
  $region5: #{lstm_model_forward.1} parent=0 // pred_fallthru
    _
  // Predicated region
  $region6: #{lstm_model_forward.1} parent=0 // pred_check
    _
  $region7: #{lstm_model_forward.1} parent=0 // pred_check_branch
    %17 = sbr.rel (0) target = $region9
  $region8: #{lstm_model_forward.1} parent=0 // pred_region
    _
  $region9: #{lstm_model_forward.1} parent=0 // pred_fallthru
    _
  // Predicated region
  $region10: #{lstm_model_forward.1} parent=0 // pred_check
    _
  $region11: #{lstm_model_forward.1} parent=0 // pred_check_branch
    %19 = sbr.rel (0) target = $region13
  $region12: #{lstm_model_forward.1} parent=0 // pred_region
    _
  $region13: #{lstm_model_forward.1} parent=0 // pred_fallthru
    _
  // Predicated region
  $region14: #{lstm_model_forward.1} parent=0 // pred_check
    _
  $region15: #{lstm_model_forward.1} parent=0 // pred_check_branch
    %21 = sbr.rel (0) target = $region17
  $region16: #{lstm_model_forward.1} parent=0 // pred_region
    _
  $region17: #{lstm_model_forward.1} parent=0 // pred_fallthru
    _
  // Predicated region
  $region18: #{lstm_model_forward.1} parent=0 // pred_check
    _
  $region19: #{lstm_model_forward.1} parent=0 // pred_check_branch
    %23 = sbr.rel (0) target = $region21
  $region20: #{lstm_model_forward.1} parent=0 // pred_region
    _
  $region21: #{lstm_model_forward.1} parent=0 // pred_fallthru
    _
  // Predicated region
  $region22: #{lstm_model_forward.1} parent=0 // pred_check
    _
  $region23: #{lstm_model_forward.1} parent=0 // pred_check_branch
    %25 = sbr.rel (0) target = $region25
  $region24: #{lstm_model_forward.1} parent=0 // pred_region
    _
  $region25: #{lstm_model_forward.1} parent=0 // pred_fallthru
    _
  // Predicated region
  $region26: #{lstm_model_forward.1} parent=0 // pred_check
    _
  $region27: #{lstm_model_forward.1} parent=0 // pred_check_branch
    %27 = sbr.rel (0) target = $region29
  $region28: #{lstm_model_forward.1} parent=0 // pred_region
    _
  $region29: #{lstm_model_forward.1} parent=0 // pred_fallthru
    _
  // Predicated region
  $region30: #{lstm_model_forward.1} parent=0 // pred_check
    _
  $region31: #{lstm_model_forward.1} parent=0 // pred_check_branch
    %29 = sbr.rel (0) target = $region33
  $region32: #{lstm_model_forward.1} parent=0 // pred_region
    _
  $region33: #{lstm_model_forward.1} parent=0 // pred_fallthru
    _
  // Predicated region
  $region34: #{lstm_model_forward.1} parent=0 // pred_check
    _
  $region35: #{lstm_model_forward.1} parent=0 // pred_check_branch
    %31 = sbr.rel (0) target = $region37
  $region36: #{lstm_model_forward.1} parent=0 // pred_region
    _
  $region37: #{lstm_model_forward.1} parent=0 // pred_fallthru
    _
  %v32 = vld [vmem:[%s0] sm:$0xff]
  %v33 = vld [vmem:[%s0 + $0x8] sm:$0xff]
  %v34 = vld [vmem:[%s0 + $0x10] sm:$0xff]
  %v35 = vld [vmem:[%s0 + $0x18] sm:$0xff]
  %v36 = vld [vmem:[%s0 + $0x20] sm:$0xff]
  %v37 = vld [vmem:[%s0 + $0x28] sm:$0xff]
  %v38 = vld [vmem:[%s0 + $0x30] sm:$0xff]
  %v39 = vld [vmem:[%s0 + $0x38] sm:$0xff]
  %v40 = vld [vmem:[%s1] sm:$0xf]
  %v41 = vld [vmem:[%s2] sm:$0xff]
  %v42 = vld [vmem:[%s2 + $0x8] sm:$0xff]
  %v43 = vld [vmem:[%s2 + $0x10] sm:$0xff]
  %v44 = vld [vmem:[%s2 + $0x18] sm:$0xff]
  %v45 = vld [vmem:[%s3] sm:$0x1]
  %v47 = vperm.slane %v45, 0
  %vm49 = vcmask 31744
  %v51 = vsel %vm49, %v32, 0
  %v54 = vsel %vm49, %v33, 0
  %v57 = vsel %vm49, %v34, 0
  %v60 = vsel %vm49, %v35, 0
  %v63 = vsel %vm49, %v36, 0
  %v66 = vsel %vm49, %v37, 0
  %v69 = vsel %vm49, %v38, 0
  %v72 = vsel %vm49, %v39, 0
  %vm74 = vcmask 1043456
  %v76 = vsel %vm74, %v40, 0
  %78 = vmatpush.msra.mxu0 0.0
  %79 = vmatpush.msra.mxu0 0.0
  %80 = vmatpush.msra.mxu0 0.0
  %81 = vmatpush.msra.mxu0 0.0
  %82 = vmatpush.msra.mxu0 0.0
  %83 = vmatpush.msra.mxu0 0.0
  %84 = vmatpush.msra.mxu0 0.0
  %85 = vmatpush.msra.mxu0 0.0
  %86 = vmatpush.msra.mxu0 0.0
  %87 = vmatpush.msra.mxu0 0.0
  %88 = vmatpush.msra.mxu0 0.0
  %89 = vmatpush.msra.mxu0 0.0
  %90 = vmatpush.msra.mxu0 0.0
  %91 = vmatpush.msra.mxu0 0.0
  %92 = vmatpush.msra.mxu0 0.0
  %93 = vmatpush.msra.mxu0 %v76
  %94 = vmatmul.f32.gmra.mxu0 %v51
  %v95 = vpop.f32.mrf.mxu0
  %v96 = vadd.f32 %v47, %v95
  %97 = vmatmul.f32.gmra.mxu0 %v54
  %v98 = vpop.f32.mrf.mxu0
  %v99 = vadd.f32 %v47, %v98
  %100 = vmatmul.f32.gmra.mxu0 %v57
  %v101 = vpop.f32.mrf.mxu0
  %v102 = vadd.f32 %v47, %v101
  %103 = vmatmul.f32.gmra.mxu0 %v60
  %v104 = vpop.f32.mrf.mxu0
  %v105 = vadd.f32 %v47, %v104
  %106 = vmatmul.f32.gmra.mxu0 %v63
  %v107 = vpop.f32.mrf.mxu0
  %v108 = vadd.f32 %v47, %v107
  %109 = vmatmul.f32.gmra.mxu0 %v66
  %v110 = vpop.f32.mrf.mxu0
  %v111 = vadd.f32 %v47, %v110
  %112 = vmatmul.f32.gmra.mxu0 %v69
  %v113 = vpop.f32.mrf.mxu0
  %v114 = vadd.f32 %v47, %v113
  %115 = vmatmul.f32.gmra.mxu0 %v72
  %v116 = vpop.f32.mrf.mxu0
  %v117 = vadd.f32 %v47, %v116
  %118 = vdwg.mxu0
  %vm119 = vcmask 261120
  %v121 = vsel %vm119, 0.0, 0
  %123 = vmatpush.msra.mxu0 0.0
  %124 = vmatpush.msra.mxu0 0.0
  %125 = vmatpush.msra.mxu0 0.0
  %126 = vmatpush.msra.mxu0 0.0
  %127 = vmatpush.msra.mxu0 0.0
  %128 = vmatpush.msra.mxu0 0.0
  %129 = vmatpush.msra.mxu0 0.0
  %130 = vmatpush.msra.mxu0 0.0
  %131 = vmatpush.msra.mxu0 0.0
  %132 = vmatpush.msra.mxu0 0.0
  %133 = vmatpush.msra.mxu0 0.0
  %134 = vmatpush.msra.mxu0 0.0
  %135 = vmatpush.msra.mxu0 %v44
  %136 = vmatpush.msra.mxu0 %v43
  %137 = vmatpush.msra.mxu0 %v42
  %138 = vmatpush.msra.mxu0 %v41
  %139 = vmatmul.f32.gmra.mxu0 %v121
  %v140 = vpop.f32.mrf.mxu0
  %v141 = vadd.f32 0.0, %v140
  %142 = vdwg.mxu0
  %v143 = vadd.f32 %v96, %v141
  %v144 = vxor.u32 %v143, 2147483648
  %v145 = vmul.f32 %v144, 1.442695
  %v146 = vpow.pop %v145
  %v147 = vadd.f32 %v146, 1.0
  %v148 = vrcp.pop %v147
  %v149 = vmul.f32 %v147, %v148
  %v150 = vsub.f32 1.0, %v149
  %v151 = vmul.f32 %v148, %v150
  %v152 = vadd.f32 %v148, %v151
  %vm153 = vweird.f32 %v147
  %vm154 = vweird.f32 %v148
  %vm155 = vmor %vm153, %vm154
  %v156 = vsel %vm155, %v148, %v152
  %v157 = vand.u32 2147483647, %v147
  %vm158 = vcmp.eq.f32.partialorder %v157, 8.507059e+37
  %v159 = vand.u32 %v147, 2147483648
  %v160 = vor.u32 1.1754944e-38, %v159
  %v161 = vsel %vm158, %v160, %v156
  %v162 = vmul.f32 1.0, %v161
  %v163 = vtanh.pop %v143
  %v164 = vmul.f32 %v162, 0.0
  %166 = vrot.lane.b32.xlu0 %v163, 32
  %v167 = vpop.permute.xlu0 %166
  %v169 = vmul.f32 %v162, %v167
  %171 = vrot.lane.b32.xlu0 %v169, 32
  %v172 = vpop.permute.xlu0 %171
  %v174 = vadd.f32 %v164, %v172
  %v175 = vtanh.pop %v174
  %177 = vrot.lane.b32.xlu0 %v175, 32
  %v178 = vpop.permute.xlu0 %177
  %v180 = vmul.f32 %v162, %v178
  %182 = vrot.lane.b32.xlu0 %v180, 64
  %v183 = vpop.permute.xlu0 %182
  %v184 = vsel %vm119, %v183, 0
  %186 = vmatpush.msra.mxu0 0.0
  %187 = vmatpush.msra.mxu0 0.0
  %188 = vmatpush.msra.mxu0 0.0
  %189 = vmatpush.msra.mxu0 0.0
  %190 = vmatpush.msra.mxu0 0.0
  %191 = vmatpush.msra.mxu0 0.0
  %192 = vmatpush.msra.mxu0 0.0
  %193 = vmatpush.msra.mxu0 0.0
  %194 = vmatpush.msra.mxu0 0.0
  %195 = vmatpush.msra.mxu0 0.0
  %196 = vmatpush.msra.mxu0 0.0
  %197 = vmatpush.msra.mxu0 0.0
  %198 = vmatpush.msra.mxu0 %v44
  %199 = vmatpush.msra.mxu0 %v43
  %200 = vmatpush.msra.mxu0 %v42
  %201 = vmatpush.msra.mxu0 %v41
  %202 = vmatmul.f32.gmra.mxu0 %v184
  %v203 = vpop.f32.mrf.mxu0
  %v204 = vadd.f32 0.0, %v203
  %205 = vdwg.mxu0
  %v206 = vadd.f32 %v99, %v204
  %v207 = vxor.u32 %v206, 2147483648
  %v208 = vmul.f32 %v207, 1.442695
  %v209 = vpow.pop %v208
  %v210 = vadd.f32 %v209, 1.0
  %v211 = vrcp.pop %v210
  %v212 = vmul.f32 %v210, %v211
  %v213 = vsub.f32 1.0, %v212
  %v214 = vmul.f32 %v211, %v213
  %v215 = vadd.f32 %v211, %v214
  %vm216 = vweird.f32 %v210
  %vm217 = vweird.f32 %v211
  %vm218 = vmor %vm216, %vm217
  %v219 = vsel %vm218, %v211, %v215
  %v220 = vand.u32 2147483647, %v210
  %vm221 = vcmp.eq.f32.partialorder %v220, 8.507059e+37
  %v222 = vand.u32 %v210, 2147483648
  %v223 = vor.u32 1.1754944e-38, %v222
  %v224 = vsel %vm221, %v223, %v219
  %v225 = vmul.f32 1.0, %v224
  %v226 = vtanh.pop %v206
  %v227 = vmul.f32 %v225, %v174
  %229 = vrot.lane.b32.xlu0 %v226, 32
  %v230 = vpop.permute.xlu0 %229
  %v232 = vmul.f32 %v225, %v230
  %234 = vrot.lane.b32.xlu0 %v232, 32
  %v235 = vpop.permute.xlu0 %234
  %v237 = vadd.f32 %v227, %v235
  %v238 = vtanh.pop %v237
  %240 = vrot.lane.b32.xlu0 %v238, 32
  %v241 = vpop.permute.xlu0 %240
  %v243 = vmul.f32 %v225, %v241
  %245 = vrot.lane.b32.xlu0 %v243, 64
  %v246 = vpop.permute.xlu0 %245
  %v247 = vsel %vm119, %v246, 0
  %249 = vmatpush.msra.mxu0 0.0
  %250 = vmatpush.msra.mxu0 0.0
  %251 = vmatpush.msra.mxu0 0.0
  %252 = vmatpush.msra.mxu0 0.0
  %253 = vmatpush.msra.mxu0 0.0
  %254 = vmatpush.msra.mxu0 0.0
  %255 = vmatpush.msra.mxu0 0.0
  %256 = vmatpush.msra.mxu0 0.0
  %257 = vmatpush.msra.mxu0 0.0
  %258 = vmatpush.msra.mxu0 0.0
  %259 = vmatpush.msra.mxu0 0.0
  %260 = vmatpush.msra.mxu0 0.0
  %261 = vmatpush.msra.mxu0 %v44
  %262 = vmatpush.msra.mxu0 %v43
  %263 = vmatpush.msra.mxu0 %v42
  %264 = vmatpush.msra.mxu0 %v41
  %265 = vmatmul.f32.gmra.mxu0 %v247
  %v266 = vpop.f32.mrf.mxu0
  %v267 = vadd.f32 0.0, %v266
  %268 = vdwg.mxu0
  %v269 = vadd.f32 %v102, %v267
  %v270 = vxor.u32 %v269, 2147483648
  %v271 = vmul.f32 %v270, 1.442695
  %v272 = vpow.pop %v271
  %v273 = vadd.f32 %v272, 1.0
  %v274 = vrcp.pop %v273
  %v275 = vmul.f32 %v273, %v274
  %v276 = vsub.f32 1.0, %v275
  %v277 = vmul.f32 %v274, %v276
  %v278 = vadd.f32 %v274, %v277
  %vm279 = vweird.f32 %v273
  %vm280 = vweird.f32 %v274
  %vm281 = vmor %vm279, %vm280
  %v282 = vsel %vm281, %v274, %v278
  %v283 = vand.u32 2147483647, %v273
  %vm284 = vcmp.eq.f32.partialorder %v283, 8.507059e+37
  %v285 = vand.u32 %v273, 2147483648
  %v286 = vor.u32 1.1754944e-38, %v285
  %v287 = vsel %vm284, %v286, %v282
  %v288 = vmul.f32 1.0, %v287
  %v289 = vtanh.pop %v269
  %v290 = vmul.f32 %v288, %v237
  %292 = vrot.lane.b32.xlu0 %v289, 32
  %v293 = vpop.permute.xlu0 %292
  %v295 = vmul.f32 %v288, %v293
  %297 = vrot.lane.b32.xlu0 %v295, 32
  %v298 = vpop.permute.xlu0 %297
  %v300 = vadd.f32 %v290, %v298
  %v301 = vtanh.pop %v300
  %303 = vrot.lane.b32.xlu0 %v301, 32
  %v304 = vpop.permute.xlu0 %303
  %v306 = vmul.f32 %v288, %v304
  %308 = vrot.lane.b32.xlu0 %v306, 64
  %v309 = vpop.permute.xlu0 %308
  %v310 = vsel %vm119, %v309, 0
  %312 = vmatpush.msra.mxu0 0.0
  %313 = vmatpush.msra.mxu0 0.0
  %314 = vmatpush.msra.mxu0 0.0
  %315 = vmatpush.msra.mxu0 0.0
  %316 = vmatpush.msra.mxu0 0.0
  %317 = vmatpush.msra.mxu0 0.0
  %318 = vmatpush.msra.mxu0 0.0
  %319 = vmatpush.msra.mxu0 0.0
  %320 = vmatpush.msra.mxu0 0.0
  %321 = vmatpush.msra.mxu0 0.0
  %322 = vmatpush.msra.mxu0 0.0
  %323 = vmatpush.msra.mxu0 0.0
  %324 = vmatpush.msra.mxu0 %v44
  %325 = vmatpush.msra.mxu0 %v43
  %326 = vmatpush.msra.mxu0 %v42
  %327 = vmatpush.msra.mxu0 %v41
  %328 = vmatmul.f32.gmra.mxu0 %v310
  %v329 = vpop.f32.mrf.mxu0
  %v330 = vadd.f32 0.0, %v329
  %331 = vdwg.mxu0
  %v332 = vadd.f32 %v105, %v330
  %v333 = vxor.u32 %v332, 2147483648
  %v334 = vmul.f32 %v333, 1.442695
  %v335 = vpow.pop %v334
  %v336 = vadd.f32 %v335, 1.0
  %v337 = vrcp.pop %v336
  %v338 = vmul.f32 %v336, %v337
  %v339 = vsub.f32 1.0, %v338
  %v340 = vmul.f32 %v337, %v339
  %v341 = vadd.f32 %v337, %v340
  %vm342 = vweird.f32 %v336
  %vm343 = vweird.f32 %v337
  %vm344 = vmor %vm342, %vm343
  %v345 = vsel %vm344, %v337, %v341
  %v346 = vand.u32 2147483647, %v336
  %vm347 = vcmp.eq.f32.partialorder %v346, 8.507059e+37
  %v348 = vand.u32 %v336, 2147483648
  %v349 = vor.u32 1.1754944e-38, %v348
  %v350 = vsel %vm347, %v349, %v345
  %v351 = vmul.f32 1.0, %v350
  %v352 = vtanh.pop %v332
  %v353 = vmul.f32 %v351, %v300
  %355 = vrot.lane.b32.xlu0 %v352, 32
  %v356 = vpop.permute.xlu0 %355
  %v358 = vmul.f32 %v351, %v356
  %360 = vrot.lane.b32.xlu0 %v358, 32
  %v361 = vpop.permute.xlu0 %360
  %v363 = vadd.f32 %v353, %v361
  %v364 = vtanh.pop %v363
  %366 = vrot.lane.b32.xlu0 %v364, 32
  %v367 = vpop.permute.xlu0 %366
  %v369 = vmul.f32 %v351, %v367
  %371 = vrot.lane.b32.xlu0 %v369, 64
  %v372 = vpop.permute.xlu0 %371
  %v373 = vsel %vm119, %v372, 0
  %375 = vmatpush.msra.mxu0 0.0
  %376 = vmatpush.msra.mxu0 0.0
  %377 = vmatpush.msra.mxu0 0.0
  %378 = vmatpush.msra.mxu0 0.0
  %379 = vmatpush.msra.mxu0 0.0
  %380 = vmatpush.msra.mxu0 0.0
  %381 = vmatpush.msra.mxu0 0.0
  %382 = vmatpush.msra.mxu0 0.0
  %383 = vmatpush.msra.mxu0 0.0
  %384 = vmatpush.msra.mxu0 0.0
  %385 = vmatpush.msra.mxu0 0.0
  %386 = vmatpush.msra.mxu0 0.0
  %387 = vmatpush.msra.mxu0 %v44
  %388 = vmatpush.msra.mxu0 %v43
  %389 = vmatpush.msra.mxu0 %v42
  %390 = vmatpush.msra.mxu0 %v41
  %391 = vmatmul.f32.gmra.mxu0 %v373
  %v392 = vpop.f32.mrf.mxu0
  %v393 = vadd.f32 0.0, %v392
  %394 = vdwg.mxu0
  %v395 = vadd.f32 %v108, %v393
  %v396 = vxor.u32 %v395, 2147483648
  %v397 = vmul.f32 %v396, 1.442695
  %v398 = vpow.pop %v397
  %v399 = vadd.f32 %v398, 1.0
  %v400 = vrcp.pop %v399
  %v401 = vmul.f32 %v399, %v400
  %v402 = vsub.f32 1.0, %v401
  %v403 = vmul.f32 %v400, %v402
  %v404 = vadd.f32 %v400, %v403
  %vm405 = vweird.f32 %v399
  %vm406 = vweird.f32 %v400
  %vm407 = vmor %vm405, %vm406
  %v408 = vsel %vm407, %v400, %v404
  %v409 = vand.u32 2147483647, %v399
  %vm410 = vcmp.eq.f32.partialorder %v409, 8.507059e+37
  %v411 = vand.u32 %v399, 2147483648
  %v412 = vor.u32 1.1754944e-38, %v411
  %v413 = vsel %vm410, %v412, %v408
  %v414 = vmul.f32 1.0, %v413
  %v415 = vtanh.pop %v395
  %v416 = vmul.f32 %v414, %v363
  %418 = vrot.lane.b32.xlu0 %v415, 32
  %v419 = vpop.permute.xlu0 %418
  %v421 = vmul.f32 %v414, %v419
  %423 = vrot.lane.b32.xlu0 %v421, 32
  %v424 = vpop.permute.xlu0 %423
  %v426 = vadd.f32 %v416, %v424
  %v427 = vtanh.pop %v426
  %429 = vrot.lane.b32.xlu0 %v427, 32
  %v430 = vpop.permute.xlu0 %429
  %v432 = vmul.f32 %v414, %v430
  %434 = vrot.lane.b32.xlu0 %v432, 64
  %v435 = vpop.permute.xlu0 %434
  %v436 = vsel %vm119, %v435, 0
  %438 = vmatpush.msra.mxu0 0.0
  %439 = vmatpush.msra.mxu0 0.0
  %440 = vmatpush.msra.mxu0 0.0
  %441 = vmatpush.msra.mxu0 0.0
  %442 = vmatpush.msra.mxu0 0.0
  %443 = vmatpush.msra.mxu0 0.0
  %444 = vmatpush.msra.mxu0 0.0
  %445 = vmatpush.msra.mxu0 0.0
  %446 = vmatpush.msra.mxu0 0.0
  %447 = vmatpush.msra.mxu0 0.0
  %448 = vmatpush.msra.mxu0 0.0
  %449 = vmatpush.msra.mxu0 0.0
  %450 = vmatpush.msra.mxu0 %v44
  %451 = vmatpush.msra.mxu0 %v43
  %452 = vmatpush.msra.mxu0 %v42
  %453 = vmatpush.msra.mxu0 %v41
  %454 = vmatmul.f32.gmra.mxu0 %v436
  %v455 = vpop.f32.mrf.mxu0
  %v456 = vadd.f32 0.0, %v455
  %457 = vdwg.mxu0
  %v458 = vadd.f32 %v111, %v456
  %v459 = vxor.u32 %v458, 2147483648
  %v460 = vmul.f32 %v459, 1.442695
  %v461 = vpow.pop %v460
  %v462 = vadd.f32 %v461, 1.0
  %v463 = vrcp.pop %v462
  %v464 = vmul.f32 %v462, %v463
  %v465 = vsub.f32 1.0, %v464
  %v466 = vmul.f32 %v463, %v465
  %v467 = vadd.f32 %v463, %v466
  %vm468 = vweird.f32 %v462
  %vm469 = vweird.f32 %v463
  %vm470 = vmor %vm468, %vm469
  %v471 = vsel %vm470, %v463, %v467
  %v472 = vand.u32 2147483647, %v462
  %vm473 = vcmp.eq.f32.partialorder %v472, 8.507059e+37
  %v474 = vand.u32 %v462, 2147483648
  %v475 = vor.u32 1.1754944e-38, %v474
  %v476 = vsel %vm473, %v475, %v471
  %v477 = vmul.f32 1.0, %v476
  %v478 = vtanh.pop %v458
  %v479 = vmul.f32 %v477, %v426
  %481 = vrot.lane.b32.xlu0 %v478, 32
  %v482 = vpop.permute.xlu0 %481
  %v484 = vmul.f32 %v477, %v482
  %486 = vrot.lane.b32.xlu0 %v484, 32
  %v487 = vpop.permute.xlu0 %486
  %v489 = vadd.f32 %v479, %v487
  %v490 = vtanh.pop %v489
  %492 = vrot.lane.b32.xlu0 %v490, 32
  %v493 = vpop.permute.xlu0 %492
  %v495 = vmul.f32 %v477, %v493
  %497 = vrot.lane.b32.xlu0 %v495, 64
  %v498 = vpop.permute.xlu0 %497
  %v499 = vsel %vm119, %v498, 0
  %501 = vmatpush.msra.mxu0 0.0
  %502 = vmatpush.msra.mxu0 0.0
  %503 = vmatpush.msra.mxu0 0.0
  %504 = vmatpush.msra.mxu0 0.0
  %505 = vmatpush.msra.mxu0 0.0
  %506 = vmatpush.msra.mxu0 0.0
  %507 = vmatpush.msra.mxu0 0.0
  %508 = vmatpush.msra.mxu0 0.0
  %509 = vmatpush.msra.mxu0 0.0
  %510 = vmatpush.msra.mxu0 0.0
  %511 = vmatpush.msra.mxu0 0.0
  %512 = vmatpush.msra.mxu0 0.0
  %513 = vmatpush.msra.mxu0 %v44
  %514 = vmatpush.msra.mxu0 %v43
  %515 = vmatpush.msra.mxu0 %v42
  %516 = vmatpush.msra.mxu0 %v41
  %517 = vmatmul.f32.gmra.mxu0 %v499
  %v518 = vpop.f32.mrf.mxu0
  %v519 = vadd.f32 0.0, %v518
  %520 = vdwg.mxu0
  %v521 = vadd.f32 %v114, %v519
  %v522 = vxor.u32 %v521, 2147483648
  %v523 = vmul.f32 %v522, 1.442695
  %v524 = vpow.pop %v523
  %v525 = vadd.f32 %v524, 1.0
  %v526 = vrcp.pop %v525
  %v527 = vmul.f32 %v525, %v526
  %v528 = vsub.f32 1.0, %v527
  %v529 = vmul.f32 %v526, %v528
  %v530 = vadd.f32 %v526, %v529
  %vm531 = vweird.f32 %v525
  %vm532 = vweird.f32 %v526
  %vm533 = vmor %vm531, %vm532
  %v534 = vsel %vm533, %v526, %v530
  %v535 = vand.u32 2147483647, %v525
  %vm536 = vcmp.eq.f32.partialorder %v535, 8.507059e+37
  %v537 = vand.u32 %v525, 2147483648
  %v538 = vor.u32 1.1754944e-38, %v537
  %v539 = vsel %vm536, %v538, %v534
  %v540 = vmul.f32 1.0, %v539
  %v541 = vtanh.pop %v521
  %v542 = vmul.f32 %v540, %v489
  %544 = vrot.lane.b32.xlu0 %v541, 32
  %v545 = vpop.permute.xlu0 %544
  %v547 = vmul.f32 %v540, %v545
  %549 = vrot.lane.b32.xlu0 %v547, 32
  %v550 = vpop.permute.xlu0 %549
  %v552 = vadd.f32 %v542, %v550
  %v553 = vtanh.pop %v552
  %555 = vrot.lane.b32.xlu0 %v553, 32
  %v556 = vpop.permute.xlu0 %555
  %v558 = vmul.f32 %v540, %v556
  %560 = vrot.lane.b32.xlu0 %v558, 64
  %v561 = vpop.permute.xlu0 %560
  %v562 = vsel %vm119, %v561, 0
  %564 = vmatpush.msra.mxu0 0.0
  %565 = vmatpush.msra.mxu0 0.0
  %566 = vmatpush.msra.mxu0 0.0
  %567 = vmatpush.msra.mxu0 0.0
  %568 = vmatpush.msra.mxu0 0.0
  %569 = vmatpush.msra.mxu0 0.0
  %570 = vmatpush.msra.mxu0 0.0
  %571 = vmatpush.msra.mxu0 0.0
  %572 = vmatpush.msra.mxu0 0.0
  %573 = vmatpush.msra.mxu0 0.0
  %574 = vmatpush.msra.mxu0 0.0
  %575 = vmatpush.msra.mxu0 0.0
  %576 = vmatpush.msra.mxu0 %v44
  %577 = vmatpush.msra.mxu0 %v43
  %578 = vmatpush.msra.mxu0 %v42
  %579 = vmatpush.msra.mxu0 %v41
  %580 = vmatmul.f32.gmra.mxu0 %v562
  %v581 = vpop.f32.mrf.mxu0
  %v582 = vadd.f32 0.0, %v581
  %583 = vdwg.mxu0
  %v584 = vadd.f32 %v117, %v582
  %v585 = vxor.u32 %v584, 2147483648
  %v586 = vmul.f32 %v585, 1.442695
  %v587 = vpow.pop %v586
  %v588 = vadd.f32 %v587, 1.0
  %v589 = vrcp.pop %v588
  %v590 = vmul.f32 %v588, %v589
  %v591 = vsub.f32 1.0, %v590
  %v592 = vmul.f32 %v589, %v591
  %v593 = vadd.f32 %v589, %v592
  %vm594 = vweird.f32 %v588
  %vm595 = vweird.f32 %v589
  %vm596 = vmor %vm594, %vm595
  %v597 = vsel %vm596, %v589, %v593
  %v598 = vand.u32 2147483647, %v588
  %vm599 = vcmp.eq.f32.partialorder %v598, 8.507059e+37
  %v600 = vand.u32 %v588, 2147483648
  %v601 = vor.u32 1.1754944e-38, %v600
  %v602 = vsel %vm599, %v601, %v597
  %v603 = vmul.f32 1.0, %v602
  %v604 = vtanh.pop %v584
  %v605 = vmul.f32 %v603, %v552
  %607 = vrot.lane.b32.xlu0 %v604, 32
  %v608 = vpop.permute.xlu0 %607
  %v610 = vmul.f32 %v603, %v608
  %612 = vrot.lane.b32.xlu0 %v610, 32
  %v613 = vpop.permute.xlu0 %612
  %v615 = vadd.f32 %v605, %v613
  %v616 = vtanh.pop %v615
  %618 = vrot.lane.b32.xlu0 %v616, 32
  %v619 = vpop.permute.xlu0 %618
  %v621 = vmul.f32 %v603, %v619
  %v622 = vld [vmem:[%s4] sm:$0xff]
  %v623 = vld [vmem:[%s4 + $0x8] sm:$0xff]
  %v624 = vld [vmem:[%s4 + $0x10] sm:$0xff]
  %v625 = vld [vmem:[%s4 + $0x18] sm:$0xff]
  %v626 = vld [vmem:[%s5] sm:$0xff]
  %v627 = vld [vmem:[%s5 + $0x8] sm:$0xff]
  %v628 = vld [vmem:[%s5 + $0x10] sm:$0xff]
  %v629 = vld [vmem:[%s5 + $0x18] sm:$0xff]
  %v630 = vld [vmem:[%s6] sm:$0x1]
  %v632 = vperm.slane %v630, 0
  %635 = vrot.lane.b32.xlu0 %v621, 64
  %v636 = vpop.permute.xlu0 %635
  %v637 = vsel %vm119, %v636, 0
  %639 = vmatpush.msra.mxu0 0.0
  %640 = vmatpush.msra.mxu0 0.0
  %641 = vmatpush.msra.mxu0 0.0
  %642 = vmatpush.msra.mxu0 0.0
  %643 = vmatpush.msra.mxu0 0.0
  %644 = vmatpush.msra.mxu0 0.0
  %645 = vmatpush.msra.mxu0 0.0
  %646 = vmatpush.msra.mxu0 0.0
  %647 = vmatpush.msra.mxu0 0.0
  %648 = vmatpush.msra.mxu0 0.0
  %649 = vmatpush.msra.mxu0 0.0
  %650 = vmatpush.msra.mxu0 0.0
  %651 = vmatpush.msra.mxu0 %v625
  %652 = vmatpush.msra.mxu0 %v624
  %653 = vmatpush.msra.mxu0 %v623
  %654 = vmatpush.msra.mxu0 %v622
  %655 = vmatmul.f32.gmra.mxu0 %v184
  %v656 = vpop.f32.mrf.mxu0
  %v657 = vadd.f32 %v632, %v656
  %658 = vmatmul.f32.gmra.mxu0 %v247
  %v659 = vpop.f32.mrf.mxu0
  %v660 = vadd.f32 %v632, %v659
  %661 = vmatmul.f32.gmra.mxu0 %v310
  %v662 = vpop.f32.mrf.mxu0
  %v663 = vadd.f32 %v632, %v662
  %664 = vmatmul.f32.gmra.mxu0 %v373
  %v665 = vpop.f32.mrf.mxu0
  %v666 = vadd.f32 %v632, %v665
  %667 = vmatmul.f32.gmra.mxu0 %v436
  %v668 = vpop.f32.mrf.mxu0
  %v669 = vadd.f32 %v632, %v668
  %670 = vmatmul.f32.gmra.mxu0 %v499
  %v671 = vpop.f32.mrf.mxu0
  %v672 = vadd.f32 %v632, %v671
  %673 = vmatmul.f32.gmra.mxu0 %v562
  %v674 = vpop.f32.mrf.mxu0
  %v675 = vadd.f32 %v632, %v674
  %676 = vmatmul.f32.gmra.mxu0 %v637
  %v677 = vpop.f32.mrf.mxu0
  %v678 = vadd.f32 %v632, %v677
  %679 = vdwg.mxu0
  %680 = vmatpush.msra.mxu0 0.0
  %681 = vmatpush.msra.mxu0 0.0
  %682 = vmatpush.msra.mxu0 0.0
  %683 = vmatpush.msra.mxu0 0.0
  %684 = vmatpush.msra.mxu0 0.0
  %685 = vmatpush.msra.mxu0 0.0
  %686 = vmatpush.msra.mxu0 0.0
  %687 = vmatpush.msra.mxu0 0.0
  %688 = vmatpush.msra.mxu0 0.0
  %689 = vmatpush.msra.mxu0 0.0
  %690 = vmatpush.msra.mxu0 0.0
  %691 = vmatpush.msra.mxu0 0.0
  %692 = vmatpush.msra.mxu0 %v629
  %693 = vmatpush.msra.mxu0 %v628
  %694 = vmatpush.msra.mxu0 %v627
  %695 = vmatpush.msra.mxu0 %v626
  %696 = vmatmul.f32.gmra.mxu0 %v121
  %v697 = vpop.f32.mrf.mxu0
  %v698 = vadd.f32 0.0, %v697
  %699 = vdwg.mxu0
  %v700 = vadd.f32 %v657, %v698
  %v701 = vxor.u32 %v700, 2147483648
  %v702 = vmul.f32 %v701, 1.442695
  %v703 = vpow.pop %v702
  %v704 = vadd.f32 %v703, 1.0
  %v705 = vrcp.pop %v704
  %v706 = vmul.f32 %v704, %v705
  %v707 = vsub.f32 1.0, %v706
  %v708 = vmul.f32 %v705, %v707
  %v709 = vadd.f32 %v705, %v708
  %vm710 = vweird.f32 %v704
  %vm711 = vweird.f32 %v705
  %vm712 = vmor %vm710, %vm711
  %v713 = vsel %vm712, %v705, %v709
  %v714 = vand.u32 2147483647, %v704
  %vm715 = vcmp.eq.f32.partialorder %v714, 8.507059e+37
  %v716 = vand.u32 %v704, 2147483648
  %v717 = vor.u32 1.1754944e-38, %v716
  %v718 = vsel %vm715, %v717, %v713
  %v719 = vmul.f32 1.0, %v718
  %v720 = vtanh.pop %v700
  %v721 = vmul.f32 %v719, 0.0
  %723 = vrot.lane.b32.xlu0 %v720, 32
  %v724 = vpop.permute.xlu0 %723
  %v726 = vmul.f32 %v719, %v724
  %728 = vrot.lane.b32.xlu0 %v726, 32
  %v729 = vpop.permute.xlu0 %728
  %v731 = vadd.f32 %v721, %v729
  %v732 = vtanh.pop %v731
  %734 = vrot.lane.b32.xlu0 %v732, 32
  %v735 = vpop.permute.xlu0 %734
  %v737 = vmul.f32 %v719, %v735
  %739 = vrot.lane.b32.xlu0 %v737, 64
  %v740 = vpop.permute.xlu0 %739
  %v741 = vsel %vm119, %v740, 0
  %743 = vmatpush.msra.mxu0 0.0
  %744 = vmatpush.msra.mxu0 0.0
  %745 = vmatpush.msra.mxu0 0.0
  %746 = vmatpush.msra.mxu0 0.0
  %747 = vmatpush.msra.mxu0 0.0
  %748 = vmatpush.msra.mxu0 0.0
  %749 = vmatpush.msra.mxu0 0.0
  %750 = vmatpush.msra.mxu0 0.0
  %751 = vmatpush.msra.mxu0 0.0
  %752 = vmatpush.msra.mxu0 0.0
  %753 = vmatpush.msra.mxu0 0.0
  %754 = vmatpush.msra.mxu0 0.0
  %755 = vmatpush.msra.mxu0 %v629
  %756 = vmatpush.msra.mxu0 %v628
  %757 = vmatpush.msra.mxu0 %v627
  %758 = vmatpush.msra.mxu0 %v626
  %759 = vmatmul.f32.gmra.mxu0 %v741
  %v760 = vpop.f32.mrf.mxu0
  %v761 = vadd.f32 0.0, %v760
  %762 = vdwg.mxu0
  %v763 = vadd.f32 %v660, %v761
  %v764 = vxor.u32 %v763, 2147483648
  %v765 = vmul.f32 %v764, 1.442695
  %v766 = vpow.pop %v765
  %v767 = vadd.f32 %v766, 1.0
  %v768 = vrcp.pop %v767
  %v769 = vmul.f32 %v767, %v768
  %v770 = vsub.f32 1.0, %v769
  %v771 = vmul.f32 %v768, %v770
  %v772 = vadd.f32 %v768, %v771
  %vm773 = vweird.f32 %v767
  %vm774 = vweird.f32 %v768
  %vm775 = vmor %vm773, %vm774
  %v776 = vsel %vm775, %v768, %v772
  %v777 = vand.u32 2147483647, %v767
  %vm778 = vcmp.eq.f32.partialorder %v777, 8.507059e+37
  %v779 = vand.u32 %v767, 2147483648
  %v780 = vor.u32 1.1754944e-38, %v779
  %v781 = vsel %vm778, %v780, %v776
  %v782 = vmul.f32 1.0, %v781
  %v783 = vtanh.pop %v763
  %v784 = vmul.f32 %v782, %v731
  %786 = vrot.lane.b32.xlu0 %v783, 32
  %v787 = vpop.permute.xlu0 %786
  %v789 = vmul.f32 %v782, %v787
  %791 = vrot.lane.b32.xlu0 %v789, 32
  %v792 = vpop.permute.xlu0 %791
  %v794 = vadd.f32 %v784, %v792
  %v795 = vtanh.pop %v794
  %797 = vrot.lane.b32.xlu0 %v795, 32
  %v798 = vpop.permute.xlu0 %797
  %v800 = vmul.f32 %v782, %v798
  %802 = vrot.lane.b32.xlu0 %v800, 64
  %v803 = vpop.permute.xlu0 %802
  %v804 = vsel %vm119, %v803, 0
  %806 = vmatpush.msra.mxu0 0.0
  %807 = vmatpush.msra.mxu0 0.0
  %808 = vmatpush.msra.mxu0 0.0
  %809 = vmatpush.msra.mxu0 0.0
  %810 = vmatpush.msra.mxu0 0.0
  %811 = vmatpush.msra.mxu0 0.0
  %812 = vmatpush.msra.mxu0 0.0
  %813 = vmatpush.msra.mxu0 0.0
  %814 = vmatpush.msra.mxu0 0.0
  %815 = vmatpush.msra.mxu0 0.0
  %816 = vmatpush.msra.mxu0 0.0
  %817 = vmatpush.msra.mxu0 0.0
  %818 = vmatpush.msra.mxu0 %v629
  %819 = vmatpush.msra.mxu0 %v628
  %820 = vmatpush.msra.mxu0 %v627
  %821 = vmatpush.msra.mxu0 %v626
  %822 = vmatmul.f32.gmra.mxu0 %v804
  %v823 = vpop.f32.mrf.mxu0
  %v824 = vadd.f32 0.0, %v823
  %825 = vdwg.mxu0
  %v826 = vadd.f32 %v663, %v824
  %v827 = vxor.u32 %v826, 2147483648
  %v828 = vmul.f32 %v827, 1.442695
  %v829 = vpow.pop %v828
  %v830 = vadd.f32 %v829, 1.0
  %v831 = vrcp.pop %v830
  %v832 = vmul.f32 %v830, %v831
  %v833 = vsub.f32 1.0, %v832
  %v834 = vmul.f32 %v831, %v833
  %v835 = vadd.f32 %v831, %v834
  %vm836 = vweird.f32 %v830
  %vm837 = vweird.f32 %v831
  %vm838 = vmor %vm836, %vm837
  %v839 = vsel %vm838, %v831, %v835
  %v840 = vand.u32 2147483647, %v830
  %vm841 = vcmp.eq.f32.partialorder %v840, 8.507059e+37
  %v842 = vand.u32 %v830, 2147483648
  %v843 = vor.u32 1.1754944e-38, %v842
  %v844 = vsel %vm841, %v843, %v839
  %v845 = vmul.f32 1.0, %v844
  %v846 = vtanh.pop %v826
  %v847 = vmul.f32 %v845, %v794
  %849 = vrot.lane.b32.xlu0 %v846, 32
  %v850 = vpop.permute.xlu0 %849
  %v852 = vmul.f32 %v845, %v850
  %854 = vrot.lane.b32.xlu0 %v852, 32
  %v855 = vpop.permute.xlu0 %854
  %v857 = vadd.f32 %v847, %v855
  %v858 = vtanh.pop %v857
  %860 = vrot.lane.b32.xlu0 %v858, 32
  %v861 = vpop.permute.xlu0 %860
  %v863 = vmul.f32 %v845, %v861
  %865 = vrot.lane.b32.xlu0 %v863, 64
  %v866 = vpop.permute.xlu0 %865
  %v867 = vsel %vm119, %v866, 0
  %869 = vmatpush.msra.mxu0 0.0
  %870 = vmatpush.msra.mxu0 0.0
  %871 = vmatpush.msra.mxu0 0.0
  %872 = vmatpush.msra.mxu0 0.0
  %873 = vmatpush.msra.mxu0 0.0
  %874 = vmatpush.msra.mxu0 0.0
  %875 = vmatpush.msra.mxu0 0.0
  %876 = vmatpush.msra.mxu0 0.0
  %877 = vmatpush.msra.mxu0 0.0
  %878 = vmatpush.msra.mxu0 0.0
  %879 = vmatpush.msra.mxu0 0.0
  %880 = vmatpush.msra.mxu0 0.0
  %881 = vmatpush.msra.mxu0 %v629
  %882 = vmatpush.msra.mxu0 %v628
  %883 = vmatpush.msra.mxu0 %v627
  %884 = vmatpush.msra.mxu0 %v626
  %885 = vmatmul.f32.gmra.mxu0 %v867
  %v886 = vpop.f32.mrf.mxu0
  %v887 = vadd.f32 0.0, %v886
  %888 = vdwg.mxu0
  %v889 = vadd.f32 %v666, %v887
  %v890 = vxor.u32 %v889, 2147483648
  %v891 = vmul.f32 %v890, 1.442695
  %v892 = vpow.pop %v891
  %v893 = vadd.f32 %v892, 1.0
  %v894 = vrcp.pop %v893
  %v895 = vmul.f32 %v893, %v894
  %v896 = vsub.f32 1.0, %v895
  %v897 = vmul.f32 %v894, %v896
  %v898 = vadd.f32 %v894, %v897
  %vm899 = vweird.f32 %v893
  %vm900 = vweird.f32 %v894
  %vm901 = vmor %vm899, %vm900
  %v902 = vsel %vm901, %v894, %v898
  %v903 = vand.u32 2147483647, %v893
  %vm904 = vcmp.eq.f32.partialorder %v903, 8.507059e+37
  %v905 = vand.u32 %v893, 2147483648
  %v906 = vor.u32 1.1754944e-38, %v905
  %v907 = vsel %vm904, %v906, %v902
  %v908 = vmul.f32 1.0, %v907
  %v909 = vtanh.pop %v889
  %v910 = vmul.f32 %v908, %v857
  %912 = vrot.lane.b32.xlu0 %v909, 32
  %v913 = vpop.permute.xlu0 %912
  %v915 = vmul.f32 %v908, %v913
  %917 = vrot.lane.b32.xlu0 %v915, 32
  %v918 = vpop.permute.xlu0 %917
  %v920 = vadd.f32 %v910, %v918
  %v921 = vtanh.pop %v920
  %923 = vrot.lane.b32.xlu0 %v921, 32
  %v924 = vpop.permute.xlu0 %923
  %v926 = vmul.f32 %v908, %v924
  %928 = vrot.lane.b32.xlu0 %v926, 64
  %v929 = vpop.permute.xlu0 %928
  %v930 = vsel %vm119, %v929, 0
  %932 = vmatpush.msra.mxu0 0.0
  %933 = vmatpush.msra.mxu0 0.0
  %934 = vmatpush.msra.mxu0 0.0
  %935 = vmatpush.msra.mxu0 0.0
  %936 = vmatpush.msra.mxu0 0.0
  %937 = vmatpush.msra.mxu0 0.0
  %938 = vmatpush.msra.mxu0 0.0
  %939 = vmatpush.msra.mxu0 0.0
  %940 = vmatpush.msra.mxu0 0.0
  %941 = vmatpush.msra.mxu0 0.0
  %942 = vmatpush.msra.mxu0 0.0
  %943 = vmatpush.msra.mxu0 0.0
  %944 = vmatpush.msra.mxu0 %v629
  %945 = vmatpush.msra.mxu0 %v628
  %946 = vmatpush.msra.mxu0 %v627
  %947 = vmatpush.msra.mxu0 %v626
  %948 = vmatmul.f32.gmra.mxu0 %v930
  %v949 = vpop.f32.mrf.mxu0
  %v950 = vadd.f32 0.0, %v949
  %951 = vdwg.mxu0
  %v952 = vadd.f32 %v669, %v950
  %v953 = vxor.u32 %v952, 2147483648
  %v954 = vmul.f32 %v953, 1.442695
  %v955 = vpow.pop %v954
  %v956 = vadd.f32 %v955, 1.0
  %v957 = vrcp.pop %v956
  %v958 = vmul.f32 %v956, %v957
  %v959 = vsub.f32 1.0, %v958
  %v960 = vmul.f32 %v957, %v959
  %v961 = vadd.f32 %v957, %v960
  %vm962 = vweird.f32 %v956
  %vm963 = vweird.f32 %v957
  %vm964 = vmor %vm962, %vm963
  %v965 = vsel %vm964, %v957, %v961
  %v966 = vand.u32 2147483647, %v956
  %vm967 = vcmp.eq.f32.partialorder %v966, 8.507059e+37
  %v968 = vand.u32 %v956, 2147483648
  %v969 = vor.u32 1.1754944e-38, %v968
  %v970 = vsel %vm967, %v969, %v965
  %v971 = vmul.f32 1.0, %v970
  %v972 = vtanh.pop %v952
  %v973 = vmul.f32 %v971, %v920
  %975 = vrot.lane.b32.xlu0 %v972, 32
  %v976 = vpop.permute.xlu0 %975
  %v978 = vmul.f32 %v971, %v976
  %980 = vrot.lane.b32.xlu0 %v978, 32
  %v981 = vpop.permute.xlu0 %980
  %v983 = vadd.f32 %v973, %v981
  %v984 = vtanh.pop %v983
  %986 = vrot.lane.b32.xlu0 %v984, 32
  %v987 = vpop.permute.xlu0 %986
  %v989 = vmul.f32 %v971, %v987
  %991 = vrot.lane.b32.xlu0 %v989, 64
  %v992 = vpop.permute.xlu0 %991
  %v993 = vsel %vm119, %v992, 0
  %995 = vmatpush.msra.mxu0 0.0
  %996 = vmatpush.msra.mxu0 0.0
  %997 = vmatpush.msra.mxu0 0.0
  %998 = vmatpush.msra.mxu0 0.0
  %999 = vmatpush.msra.mxu0 0.0
  %1000 = vmatpush.msra.mxu0 0.0
  %1001 = vmatpush.msra.mxu0 0.0
  %1002 = vmatpush.msra.mxu0 0.0
  %1003 = vmatpush.msra.mxu0 0.0
  %1004 = vmatpush.msra.mxu0 0.0
  %1005 = vmatpush.msra.mxu0 0.0
  %1006 = vmatpush.msra.mxu0 0.0
  %1007 = vmatpush.msra.mxu0 %v629
  %1008 = vmatpush.msra.mxu0 %v628
  %1009 = vmatpush.msra.mxu0 %v627
  %1010 = vmatpush.msra.mxu0 %v626
  %1011 = vmatmul.f32.gmra.mxu0 %v993
  %v1012 = vpop.f32.mrf.mxu0
  %v1013 = vadd.f32 0.0, %v1012
  %1014 = vdwg.mxu0
  %v1015 = vadd.f32 %v672, %v1013
  %v1016 = vxor.u32 %v1015, 2147483648
  %v1017 = vmul.f32 %v1016, 1.442695
  %v1018 = vpow.pop %v1017
  %v1019 = vadd.f32 %v1018, 1.0
  %v1020 = vrcp.pop %v1019
  %v1021 = vmul.f32 %v1019, %v1020
  %v1022 = vsub.f32 1.0, %v1021
  %v1023 = vmul.f32 %v1020, %v1022
  %v1024 = vadd.f32 %v1020, %v1023
  %vm1025 = vweird.f32 %v1019
  %vm1026 = vweird.f32 %v1020
  %vm1027 = vmor %vm1025, %vm1026
  %v1028 = vsel %vm1027, %v1020, %v1024
  %v1029 = vand.u32 2147483647, %v1019
  %vm1030 = vcmp.eq.f32.partialorder %v1029, 8.507059e+37
  %v1031 = vand.u32 %v1019, 2147483648
  %v1032 = vor.u32 1.1754944e-38, %v1031
  %v1033 = vsel %vm1030, %v1032, %v1028
  %v1034 = vmul.f32 1.0, %v1033
  %v1035 = vtanh.pop %v1015
  %v1036 = vmul.f32 %v1034, %v983
  %1038 = vrot.lane.b32.xlu0 %v1035, 32
  %v1039 = vpop.permute.xlu0 %1038
  %v1041 = vmul.f32 %v1034, %v1039
  %1043 = vrot.lane.b32.xlu0 %v1041, 32
  %v1044 = vpop.permute.xlu0 %1043
  %v1046 = vadd.f32 %v1036, %v1044
  %v1047 = vtanh.pop %v1046
  %1049 = vrot.lane.b32.xlu0 %v1047, 32
  %v1050 = vpop.permute.xlu0 %1049
  %v1052 = vmul.f32 %v1034, %v1050
  %1054 = vrot.lane.b32.xlu0 %v1052, 64
  %v1055 = vpop.permute.xlu0 %1054
  %v1056 = vsel %vm119, %v1055, 0
  %1058 = vmatpush.msra.mxu0 0.0
  %1059 = vmatpush.msra.mxu0 0.0
  %1060 = vmatpush.msra.mxu0 0.0
  %1061 = vmatpush.msra.mxu0 0.0
  %1062 = vmatpush.msra.mxu0 0.0
  %1063 = vmatpush.msra.mxu0 0.0
  %1064 = vmatpush.msra.mxu0 0.0
  %1065 = vmatpush.msra.mxu0 0.0
  %1066 = vmatpush.msra.mxu0 0.0
  %1067 = vmatpush.msra.mxu0 0.0
  %1068 = vmatpush.msra.mxu0 0.0
  %1069 = vmatpush.msra.mxu0 0.0
  %1070 = vmatpush.msra.mxu0 %v629
  %1071 = vmatpush.msra.mxu0 %v628
  %1072 = vmatpush.msra.mxu0 %v627
  %1073 = vmatpush.msra.mxu0 %v626
  %1074 = vmatmul.f32.gmra.mxu0 %v1056
  %v1075 = vpop.f32.mrf.mxu0
  %v1076 = vadd.f32 0.0, %v1075
  %1077 = vdwg.mxu0
  %v1078 = vadd.f32 %v675, %v1076
  %v1079 = vxor.u32 %v1078, 2147483648
  %v1080 = vmul.f32 %v1079, 1.442695
  %v1081 = vpow.pop %v1080
  %v1082 = vadd.f32 %v1081, 1.0
  %v1083 = vrcp.pop %v1082
  %v1084 = vmul.f32 %v1082, %v1083
  %v1085 = vsub.f32 1.0, %v1084
  %v1086 = vmul.f32 %v1083, %v1085
  %v1087 = vadd.f32 %v1083, %v1086
  %vm1088 = vweird.f32 %v1082
  %vm1089 = vweird.f32 %v1083
  %vm1090 = vmor %vm1088, %vm1089
  %v1091 = vsel %vm1090, %v1083, %v1087
  %v1092 = vand.u32 2147483647, %v1082
  %vm1093 = vcmp.eq.f32.partialorder %v1092, 8.507059e+37
  %v1094 = vand.u32 %v1082, 2147483648
  %v1095 = vor.u32 1.1754944e-38, %v1094
  %v1096 = vsel %vm1093, %v1095, %v1091
  %v1097 = vmul.f32 1.0, %v1096
  %v1098 = vtanh.pop %v1078
  %v1099 = vmul.f32 %v1097, %v1046
  %1101 = vrot.lane.b32.xlu0 %v1098, 32
  %v1102 = vpop.permute.xlu0 %1101
  %v1104 = vmul.f32 %v1097, %v1102
  %1106 = vrot.lane.b32.xlu0 %v1104, 32
  %v1107 = vpop.permute.xlu0 %1106
  %v1109 = vadd.f32 %v1099, %v1107
  %v1110 = vtanh.pop %v1109
  %1112 = vrot.lane.b32.xlu0 %v1110, 32
  %v1113 = vpop.permute.xlu0 %1112
  %v1115 = vmul.f32 %v1097, %v1113
  %1117 = vrot.lane.b32.xlu0 %v1115, 64
  %v1118 = vpop.permute.xlu0 %1117
  %v1119 = vsel %vm119, %v1118, 0
  %1121 = vmatpush.msra.mxu0 0.0
  %1122 = vmatpush.msra.mxu0 0.0
  %1123 = vmatpush.msra.mxu0 0.0
  %1124 = vmatpush.msra.mxu0 0.0
  %1125 = vmatpush.msra.mxu0 0.0
  %1126 = vmatpush.msra.mxu0 0.0
  %1127 = vmatpush.msra.mxu0 0.0
  %1128 = vmatpush.msra.mxu0 0.0
  %1129 = vmatpush.msra.mxu0 0.0
  %1130 = vmatpush.msra.mxu0 0.0
  %1131 = vmatpush.msra.mxu0 0.0
  %1132 = vmatpush.msra.mxu0 0.0
  %1133 = vmatpush.msra.mxu0 %v629
  %1134 = vmatpush.msra.mxu0 %v628
  %1135 = vmatpush.msra.mxu0 %v627
  %1136 = vmatpush.msra.mxu0 %v626
  %1137 = vmatmul.f32.gmra.mxu0 %v1119
  %v1138 = vpop.f32.mrf.mxu0
  %v1139 = vadd.f32 0.0, %v1138
  %1140 = vdwg.mxu0
  %v1141 = vadd.f32 %v678, %v1139
  %v1142 = vxor.u32 %v1141, 2147483648
  %v1143 = vmul.f32 %v1142, 1.442695
  %v1144 = vpow.pop %v1143
  %v1145 = vadd.f32 %v1144, 1.0
  %v1146 = vrcp.pop %v1145
  %v1147 = vmul.f32 %v1145, %v1146
  %v1148 = vsub.f32 1.0, %v1147
  %v1149 = vmul.f32 %v1146, %v1148
  %v1150 = vadd.f32 %v1146, %v1149
  %vm1151 = vweird.f32 %v1145
  %vm1152 = vweird.f32 %v1146
  %vm1153 = vmor %vm1151, %vm1152
  %v1154 = vsel %vm1153, %v1146, %v1150
  %v1155 = vand.u32 2147483647, %v1145
  %vm1156 = vcmp.eq.f32.partialorder %v1155, 8.507059e+37
  %v1157 = vand.u32 %v1145, 2147483648
  %v1158 = vor.u32 1.1754944e-38, %v1157
  %v1159 = vsel %vm1156, %v1158, %v1154
  %v1160 = vmul.f32 1.0, %v1159
  %v1161 = vtanh.pop %v1141
  %v1162 = vmul.f32 %v1160, %v1109
  %1164 = vrot.lane.b32.xlu0 %v1161, 32
  %v1165 = vpop.permute.xlu0 %1164
  %v1167 = vmul.f32 %v1160, %v1165
  %1169 = vrot.lane.b32.xlu0 %v1167, 32
  %v1170 = vpop.permute.xlu0 %1169
  %v1172 = vadd.f32 %v1162, %v1170
  %v1173 = vtanh.pop %v1172
  %1175 = vrot.lane.b32.xlu0 %v1173, 32
  %v1176 = vpop.permute.xlu0 %1175
  %v1178 = vmul.f32 %v1160, %v1176
  %v1179 = vld [vmem:[%s7] sm:$0xff]
  %v1180 = vld [vmem:[%s7 + $0x8] sm:$0xff]
  %v1181 = vld [vmem:[%s7 + $0x10] sm:$0xff]
  %v1182 = vld [vmem:[%s7 + $0x18] sm:$0xff]
  %v1183 = vld [vmem:[%s8] sm:$0x1]
  %v1185 = vperm.slane %v1183, 0
  %1188 = vrot.lane.b32.xlu0 %v1178, 64
  %v1189 = vpop.permute.xlu0 %1188
  %v1190 = vsel %vm119, %v1189, 0
  %1192 = vmatpush.msra.mxu0 0.0
  %1193 = vmatpush.msra.mxu0 0.0
  %1194 = vmatpush.msra.mxu0 0.0
  %1195 = vmatpush.msra.mxu0 0.0
  %1196 = vmatpush.msra.mxu0 0.0
  %1197 = vmatpush.msra.mxu0 0.0
  %1198 = vmatpush.msra.mxu0 0.0
  %1199 = vmatpush.msra.mxu0 0.0
  %1200 = vmatpush.msra.mxu0 0.0
  %1201 = vmatpush.msra.mxu0 0.0
  %1202 = vmatpush.msra.mxu0 0.0
  %1203 = vmatpush.msra.mxu0 0.0
  %1204 = vmatpush.msra.mxu0 %v1182
  %1205 = vmatpush.msra.mxu0 %v1181
  %1206 = vmatpush.msra.mxu0 %v1180
  %1207 = vmatpush.msra.mxu0 %v1179
  %1208 = vmatmul.f32.gmra.mxu0 %v1190
  %v1209 = vpop.f32.mrf.mxu0
  %v1210 = vadd.f32 %v1185, %v1209
  %1211 = vdwg.mxu0
  %1212 = vst.msk [vmem:[%s9] sm:$0xff] %vm49, %v1210
  // Predicated region
  $region38: #{lstm_model_forward.1} parent=0 // pred_check
    _
  $region39: #{lstm_model_forward.1} parent=0 // pred_check_branch
    %1214 = sbr.rel (0) target = $region41
  $region40: #{lstm_model_forward.1} parent=0 // pred_region
    _
  $region41: #{lstm_model_forward.1} parent=0 // pred_fallthru
    _
  // Predicated region
  $region42: #{lstm_model_forward.1} parent=0 // pred_check
    _
  $region43: #{lstm_model_forward.1} parent=0 // pred_check_branch
    %1216 = sbr.rel (0) target = $region45
  $region44: #{lstm_model_forward.1} parent=0 // pred_region
    _
  $region45: #{lstm_model_forward.1} parent=0 // pred_fallthru
    _

</llo_original>
